<compile_context>
chip_gen: v7x
topology: tpu7x:2x2x1
jax: 0.10.0
libtpu: 0.0.40
codegen_flags: <defaults>
</compile_context>

<pallas_src>
import functools

import jax
import jax.numpy as jnp
from jax.experimental import pallas as pl
from jax.experimental.pallas import tpu as pltpu


def _default_vmem_limit():
    try:
        cap = int(pltpu.get_tpu_info().vmem_capacity_bytes)
        return max(32 * 1024 * 1024, min((cap * 3) // 4, 96 * 1024 * 1024))
    except Exception:
        return 48 * 1024 * 1024


_VMEM_LIMIT = _default_vmem_limit()
_TILE_BUDGET = 4 * 1024 * 1024       # target bytes per streamed input block
_ACC_BUDGET = 1024 * 1024            # target bytes for in-kernel f32 accumulators
_TM_CAP = 1024                       # keep matmul grids from collapsing to 1 step

_PAIRED_CONV_OK = None               # lazily validated fast conv path


# ---------------------------------------------------------------------------
# tiling helpers
# ---------------------------------------------------------------------------
def _pick_pow2_divisor(total, cap):
    """Largest power-of-two divisor of `total` that is <= cap (>= 1)."""
    t = 1
    cap = max(1, min(total, cap))
    while t * 2 <= cap and total % (t * 2) == 0:
        t *= 2
    return t


def _pick_tk(k, cap):
    """Largest multiple-of-128 divisor of k that is <= cap (k % 128 == 0)."""
    cap = min(k, max(128, cap))
    d = cap - cap % 128
    while d >= 128:
        if k % d == 0:
            return d
        d -= 128
    return k


# ---------------------------------------------------------------------------
# Pallas kernels
# ---------------------------------------------------------------------------
def _mm_kernel(a_ref, b_ref, bias_ref, *rest, activation, with_stats, multi_k):
    """Tiled matmul + bias (+ReLU), optional fused per-channel sum / sum-sq."""
    if with_stats:
        if multi_k:
            o_ref, s_ref, sq_ref, acc_ref = rest
        else:
            o_ref, s_ref, sq_ref = rest
            acc_ref = None
    else:
        if multi_k:
            o_ref, acc_ref = rest
        else:
            (o_ref,) = rest
            acc_ref = None

    def epilogue(acc):
        out = acc + bias_ref[...]
        if activation == "relu":
            out = jnp.maximum(out, 0.0)
        o_ref[...] = out.astype(o_ref.dtype)
        if with_stats:
            tn = out.shape[-1]
            s_ref[...] = jnp.sum(out, axis=0).reshape(1, 1, tn)
            sq_ref[...] = jnp.sum(out * out, axis=0).reshape(1, 1, tn)

    if acc_ref is None:              # single K step: no accumulator / no gating
        epilogue(jnp.dot(a_ref[...], b_ref[...],
                         preferred_element_type=jnp.float32))
    else:
        k = pl.program_id(2)

        @pl.when(k == 0)
        def _():
            acc_ref[...] = jnp.zeros_like(acc_ref)

        acc_ref[...] += jnp.dot(a_ref[...], b_ref[...],
                                preferred_element_type=jnp.float32)

        @pl.when(k == pl.num_programs(2) - 1)
        def _():
            epilogue(acc_ref[...])


def _conv_paired_kernel(x_ref, w_ref, b_ref, y_ref, s_ref, sq_ref, acc_ref, *,
                        rh, wo, cc):
    """5x5/stride-2 conv in the paired-column view.

    x_ref : (1, Hp, WpH, CC)  padded input of one batch element (resident),
            Hp = 2*ho + 4, WpH = wo + 2, CC = 2*Cin.
    w_ref : (5, 3, CC, tn)    per-(kh, super-col-offset) packed weights.
    Fused bias + ReLU + per-channel sum / sum-of-squares (BatchNorm stats).
    """
    r = pl.program_id(2)
    row0 = pl.multiple_of(r * (2 * rh), 2 * rh)

    rows = x_ref[0, pl.ds(row0, 2 * rh + 4), :, :]          # (2rh+4, WpH, CC)
    wph = rows.shape[1]
    v = rows.reshape(rh + 2, 2, wph, cc)                     # row-parity split (free)
    # Hoist the 3 unaligned super-column shifts out of the 15-tap loop.
    shifted = [v[:, :, dsw:dsw + wo, :] for dsw in range(3)]

    first = True
    for kh in range(5):
        par = kh % 2
        dh = kh // 2
        for dsw in range(3):
            a = shifted[dsw][dh:dh + rh, par].reshape(rh * wo, cc)
            contrib = jnp.dot(a, w_ref[kh, dsw],
                              preferred_element_type=jnp.float32)
            if first:
                acc_ref[...] = contrib
                first = False
            else:
                acc_ref[...] += contrib

    out = jnp.maximum(acc_ref[...] + b_ref[...], 0.0)        # (rh*wo, tn) f32
    tn = out.shape[-1]
    y_ref[...] = out.astype(y_ref.dtype).reshape(1, rh, wo, tn)
    s_ref[...] = jnp.sum(out, axis=0).reshape(1, 1, 1, tn)
    sq_ref[...] = jnp.sum(out * out, axis=0).reshape(1, 1, 1, tn)


def _bn_pad_kernel(x_ref, s_ref, sq_ref, g_ref, b_ref, o_ref, *, m_total, eps):
    """Fused training-mode BatchNorm normalize + zero-pad(2) in the paired view.

    x_ref : (1, Hi, Wh, C2)        conv output (paired columns, C2 = 2*C)
    o_ref : (1, Hi+4, Wh+2, C2)    padded, normalized input for the next conv
    """
    inv_m = 1.0 / m_total
    mean = s_ref[...].reshape(1, 1, -1) * inv_m
    var = jnp.maximum(sq_ref[...].reshape(1, 1, -1) * inv_m - mean * mean, 0.0)
    scale = jax.lax.rsqrt(var + eps) * g_ref[...].reshape(1, 1, -1)
    shift = b_ref[...].reshape(1, 1, -1) - mean * scale

    x = x_ref[0].astype(jnp.float32)                          # (Hi, Wh, C2)
    xn = (x * scale + shift).astype(o_ref.dtype)
    hi, wh, c2 = xn.shape
    zc = jnp.zeros((hi, 1, c2), o_ref.dtype)
    xw = jnp.concatenate([zc, xn, zc], axis=1)                # (Hi, Wh+2, C2)
    zr = jnp.zeros((2, wh + 2, c2), o_ref.dtype)
    o_ref[0] = jnp.concatenate([zr, xw, zr], axis=0)          # (Hi+4, Wh+2, C2)


def _bn_kernel(x_ref, s_ref, sq_ref, g_ref, b_ref, o_ref, *, m_total, eps):
    """Plain training-mode BatchNorm normalize on (M, C) (last layer only)."""
    inv_m = 1.0 / m_total
    mean = s_ref[...] * inv_m
    var = jnp.maximum(sq_ref[...] * inv_m - mean * mean, 0.0)
    scale = jax.lax.rsqrt(var + eps) * g_ref[...]
    x = x_ref[...].astype(jnp.float32)
    o_ref[...] = ((x - mean) * scale + b_ref[...]).astype(o_ref.dtype)


# ---------------------------------------------------------------------------
# Pallas wrappers
# ---------------------------------------------------------------------------
def matmul_bias_relu(a, b, bias, activation="relu", with_stats=True):
    """(M,K)x(K,N) + bias(1,N) [+ReLU].  bf16 operands / f32 accumulation.
    If with_stats, also returns per-channel partial sum / sum-sq (nm,1,N)."""
    M, K = a.shape
    K2, N = b.shape
    assert K == K2 and K % 128 == 0
    esz = a.dtype.itemsize
    tn = 256 if (N > 256 and N % 256 == 0) else N
    nn = N // tn
    tk = _pick_tk(K, _TILE_BUDGET // (tn * esz))
    nk = K // tk
    tm_cap = max(8, min(_TM_CAP, _TILE_BUDGET // (tk * esz)))
    tm = _pick_pow2_divisor(M, tm_cap)
    nm = M // tm

    kernel = functools.partial(_mm_kernel, activation=activation,
                               with_stats=with_stats, multi_k=(nk > 1))
    scratch = [pltpu.VMEM((tm, tn), jnp.float32)] if nk > 1 else []

    out_shape = jax.ShapeDtypeStruct((M, N), jnp.bfloat16)
    out_spec = pl.BlockSpec((tm, tn), lambda i, j, k: (i, j))
    if with_stats:
        out_shape = (out_shape,
                     jax.ShapeDtypeStruct((nm, 1, N), jnp.float32),
                     jax.ShapeDtypeStruct((nm, 1, N), jnp.float32))
        out_spec = (out_spec,
                    pl.BlockSpec((1, 1, tn), lambda i, j, k: (i, 0, j)),
                    pl.BlockSpec((1, 1, tn), lambda i, j, k: (i, 0, j)))

    return pl.pallas_call(
        kernel,
        out_shape=out_shape,
        grid_spec=pltpu.PrefetchScalarGridSpec(
            num_scalar_prefetch=0,
            grid=(nm, nn, nk),
            in_specs=[
                pl.BlockSpec((tm, tk), lambda i, j, k: (i, k)),
                pl.BlockSpec((tk, tn), lambda i, j, k: (k, j)),
                pl.BlockSpec((1, tn), lambda i, j, k: (0, j)),
            ],
            out_specs=out_spec,
            scratch_shapes=scratch,
        ),
        compiler_params=pltpu.CompilerParams(
            dimension_semantics=("parallel", "parallel", "arbitrary"),
            vmem_limit_bytes=_VMEM_LIMIT,
        ),
    )(a, b, bias)


def _conv_paired_call(xp_pad, w_pack, bias, ho, wo):
    """In-kernel 5x5/stride-2 conv on a pre-padded, pre-normalized NHWC input.
    xp_pad: (B, 2*ho+4, 2*wo+4, Cin) bf16; w_pack: (5, 3, 2*Cin, Cout) bf16."""
    B, Hp, Wp, cin = xp_pad.shape
    assert Wp % 2 == 0 and wo % 8 == 0
    cc = 2 * cin
    wph = Wp // 2
    cout = w_pack.shape[-1]
    xp = xp_pad.reshape(B, Hp, wph, cc)          # free paired-column view

    tn = 256 if (cout > 256 and cout % 256 == 0) else cout
    nc = cout // tn
    rh = _pick_pow2_divisor(ho, max(1, _ACC_BUDGET // (wo * tn * 4)))
    nr = ho // rh

    kernel = functools.partial(_conv_paired_kernel, rh=rh, wo=wo, cc=cc)
    y, s, sq = pl.pallas_call(
        kernel,
        out_shape=(jax.ShapeDtypeStruct((B, ho, wo, cout), jnp.bfloat16),
                   jax.ShapeDtypeStruct((B, nr, 1, cout), jnp.float32),
                   jax.ShapeDtypeStruct((B, nr, 1, cout), jnp.float32)),
        grid_spec=pltpu.PrefetchScalarGridSpec(
            num_scalar_prefetch=0,
            # cout-tile outermost: weight blocks streamed from HBM once,
            # the per-batch input block stays resident across the row tiles.
            grid=(nc, B, nr),
            in_specs=[
                pl.BlockSpec((1, Hp, wph, cc), lambda c, b, r: (b, 0, 0, 0)),
                pl.BlockSpec((5, 3, cc, tn), lambda c, b, r: (0, 0, 0, c)),
                pl.BlockSpec((1, tn), lambda c, b, r: (0, c)),
            ],
            out_specs=(
                pl.BlockSpec((1, rh, wo, tn), lambda c, b, r: (b, r, 0, c)),
                pl.BlockSpec((1, 1, 1, tn), lambda c, b, r: (b, r, 0, c)),
                pl.BlockSpec((1, 1, 1, tn), lambda c, b, r: (b, r, 0, c)),
            ),
            scratch_shapes=[pltpu.VMEM((rh * wo, tn), jnp.float32)],
        ),
        compiler_params=pltpu.CompilerParams(
            dimension_semantics=("parallel", "parallel", "parallel"),
            vmem_limit_bytes=_VMEM_LIMIT,
        ),
    )(xp, w_pack, bias)
    return y, s.reshape(B * nr, 1, cout), sq.reshape(B * nr, 1, cout)


def _conv_im2col_padded(xp, w_taps, bias, ho, wo):
    """im2col + tiled matmul path on a pre-padded NHWC input
    (layer 1 and the tiny layers with output width < 16)."""
    B = xp.shape[0]
    cin = xp.shape[-1]
    cout = w_taps.shape[-1]
    slabs = [xp[:, kh:kh + 2 * ho:2, kw:kw + 2 * wo:2, :]
             for kh in range(5) for kw in range(5)]
    patches = jnp.stack(slabs, axis=3).reshape(B * ho * wo, 25 * cin)
    wmat = w_taps.reshape(25 * cin, cout)
    K = 25 * cin
    if K % 128 != 0:                 # pad ragged K (e.g. Cin=3 -> 75) up to x128
        kp = ((K + 127) // 128) * 128 - K
        patches = jnp.pad(patches, ((0, 0), (0, kp)))
        wmat = jnp.pad(wmat, ((0, kp), (0, 0)))
    y, s, sq = matmul_bias_relu(patches, wmat, bias, activation="relu",
                                with_stats=True)
    return y.reshape(B, ho, wo, cout), s, sq


def _paired_conv_selfcheck():
    """One-time validation of the paired conv path against lax.conv."""
    k1, k2 = jax.random.split(jax.random.PRNGKey(123))
    B, H, W, cin, cout = 1, 32, 32, 64, 128
    x = jax.random.normal(k1, (B, H, W, cin), jnp.float32).astype(jnp.bfloat16)
    w = (jax.random.normal(k2, (5, 5, cin, cout), jnp.float32)
         / jnp.sqrt(cin * 25.0))
    w6 = jnp.concatenate([w, jnp.zeros((5, 1, cin, cout), w.dtype)], axis=1)
    w_pack = w6.reshape(5, 3, 2 * cin, cout).astype(jnp.bfloat16)
    bias = jnp.zeros((1, cout), jnp.float32)
    xp = jnp.pad(x, ((0, 0), (2, 2), (2, 2), (0, 0)))
    y, s, _ = _conv_paired_call(xp, w_pack, bias, H // 2, W // 2)
    ref = jax.lax.conv_general_dilated(
        x.astype(jnp.float32), w, window_strides=(2, 2),
        padding=((2, 2), (2, 2)), dimension_numbers=("NHWC", "HWIO", "NHWC"))
    ref = jnp.maximum(ref, 0.0)
    ok = bool(jnp.allclose(y.astype(jnp.float32), ref, atol=5e-2, rtol=5e-2))
    ok &= bool(jnp.allclose(jnp.sum(s, axis=0).reshape(-1),
                            jnp.sum(ref, axis=(0, 1, 2)), atol=2.0, rtol=2e-2))
    return ok


def _paired_conv_enabled():
    global _PAIRED_CONV_OK
    if _PAIRED_CONV_OK is None:
        try:
            _PAIRED_CONV_OK = _paired_conv_selfcheck()
        except Exception:
            _PAIRED_CONV_OK = False
    return _PAIRED_CONV_OK


def conv5x5_padded(xp, w_taps, w_pack, bias, ho, wo):
    """Dispatch: paired in-kernel conv when eligible, else im2col matmul."""
    global _PAIRED_CONV_OK
    cin = w_taps.shape[1]
    if cin % 64 == 0 and wo % 16 == 0 and _paired_conv_enabled():
        try:
            return _conv_paired_call(xp, w_pack, bias, ho, wo)
        except Exception:            # lowering failure for this shape -> fallback
            _PAIRED_CONV_OK = False
    return _conv_im2col_padded(xp, w_taps, bias, ho, wo)


def bn_pad_planes(y, s, sq, gamma, beta, m_total, eps=1e-5):
    """Fused BatchNorm normalize + zero-pad(2): y (B,Hi,Wi,C) bf16 ->
    (B, Hi+4, Wi+4, C) bf16, ready for the next conv (paired/im2col view)."""
    B, Hi, Wi, C = y.shape
    assert Wi % 2 == 0
    C2 = 2 * C
    Wh = Wi // 2
    x2 = y.reshape(B, Hi, Wh, C2)                  # free paired-column view
    s2 = jnp.concatenate([s, s], axis=-1)
    sq2 = jnp.concatenate([sq, sq], axis=-1)
    g2 = jnp.concatenate([gamma, gamma], axis=-1)
    b2 = jnp.concatenate([beta, beta], axis=-1)
    tc = C2 if C2 <= 512 else 512
    nc = C2 // tc

    kernel = functools.partial(_bn_pad_kernel, m_total=float(m_total), eps=eps)
    out = pl.pallas_call(
        kernel,
        out_shape=jax.ShapeDtypeStruct((B, Hi + 4, Wh + 2, C2), jnp.bfloat16),
        grid_spec=pltpu.PrefetchScalarGridSpec(
            num_scalar_prefetch=0,
            grid=(B, nc),
            in_specs=[
                pl.BlockSpec((1, Hi, Wh, tc), lambda b, c: (b, 0, 0, c)),
                pl.BlockSpec((1, tc), lambda b, c: (0, c)),
                pl.BlockSpec((1, tc), lambda b, c: (0, c)),
                pl.BlockSpec((1, tc), lambda b, c: (0, c)),
                pl.BlockSpec((1, tc), lambda b, c: (0, c)),
            ],
            out_specs=pl.BlockSpec((1, Hi + 4, Wh + 2, tc),
                                   lambda b, c: (b, 0, 0, c)),
        ),
        compiler_params=pltpu.CompilerParams(
            dimension_semantics=("parallel", "parallel"),
            vmem_limit_bytes=_VMEM_LIMIT,
        ),
    )(x2, s2, sq2, g2, b2)
    return out.reshape(B, Hi + 4, Wi + 4, C)


def batchnorm_norm(x, s, sq, gamma, beta, m_total, eps=1e-5):
    """Normalize rows of x:(M,C) bf16 with precomputed f32 sums (last layer)."""
    M, C = x.shape
    tm = _pick_pow2_divisor(M, max(8, _TILE_BUDGET // (C * x.dtype.itemsize)))
    nm = M // tm
    kernel = functools.partial(_bn_kernel, m_total=float(m_total), eps=eps)
    return pl.pallas_call(
        kernel,
        out_shape=jax.ShapeDtypeStruct((M, C), x.dtype),
        grid_spec=pltpu.PrefetchScalarGridSpec(
            num_scalar_prefetch=0,
            grid=(nm,),
            in_specs=[
                pl.BlockSpec((tm, C), lambda i: (i, 0)),
                pl.BlockSpec((1, C), lambda i: (0, 0)),
                pl.BlockSpec((1, C), lambda i: (0, 0)),
                pl.BlockSpec((1, C), lambda i: (0, 0)),
                pl.BlockSpec((1, C), lambda i: (0, 0)),
            ],
            out_specs=pl.BlockSpec((tm, C), lambda i: (i, 0)),
        ),
        compiler_params=pltpu.CompilerParams(
            dimension_semantics=("parallel",),
            vmem_limit_bytes=_VMEM_LIMIT,
        ),
    )(x, s, sq, gamma, beta)


# ---------------------------------------------------------------------------
# Layer composition (bf16 activations stay resident between layers)
# ---------------------------------------------------------------------------
def discriminator_forward(params, local_x, global_x):
    B = local_x.shape[0]

    def branch(x, prefix, n_layers):
        h = jnp.transpose(x, (0, 2, 3, 1)).astype(jnp.bfloat16)   # NCHW -> NHWC
        padded = False
        for i in range(n_layers):
            w_taps, w_pack, bias, gamma, beta = params[f"{prefix}{i + 1}"]
            cout = w_taps.shape[-1]
            xp = h if padded else jnp.pad(h, ((0, 0), (2, 2), (2, 2), (0, 0)))
            Hi, Wi = xp.shape[1] - 4, xp.shape[2] - 4
            ho, wo = Hi // 2, Wi // 2
            if i == 0:
                y, s, sq = _conv_im2col_padded(xp, w_taps, bias, ho, wo)
            else:
                y, s, sq = conv5x5_padded(xp, w_taps, w_pack, bias, ho, wo)
            s = jnp.sum(s, axis=0).reshape(1, cout)     # reduce partial stats
            sq = jnp.sum(sq, axis=0).reshape(1, cout)
            m_total = B * ho * wo
            if i == n_layers - 1:
                yn = batchnorm_norm(y.reshape(m_total, cout), s, sq,
                                    gamma, beta, m_total)
                h = yn.reshape(B, ho, wo, cout)
                padded = False
            else:
                h = bn_pad_planes(y, s, sq, gamma, beta, m_total)
                padded = True
        # PyTorch .view(-1, 8192) flattens in (C, H, W) order
        return jnp.transpose(h, (0, 3, 1, 2)).reshape(B, -1)       # (B, 8192)

    yf = branch(local_x, "local", 5)
    zf = branch(global_x, "global", 6)

    # Shared fc applied once to both branches (fc weight streamed once).
    fc_w, fc_b = params["fc"]
    both = jnp.concatenate([yf, zf], axis=0)                       # (2B, 8192)
    fc_out = matmul_bias_relu(both, fc_w, fc_b, activation="relu",
                              with_stats=False)
    y, z = fc_out[:B], fc_out[B:]

    # final_fc (2048 -> 1) + sigmoid: N=1 is too small for a pallas_call.
    cat = jnp.concatenate([y, z], axis=1).astype(jnp.float32)      # (B, 2048)
    ffc_w, ffc_b = params["final_fc"]
    return jax.nn.sigmoid(jnp.dot(cat, ffc_w) + ffc_b)             # (B, 1)


# ---------------------------------------------------------------------------
# Deterministic synthetic parameters (match the module's shapes)
# ---------------------------------------------------------------------------
def init_params(key):
    params = {}
    local_chs = [(3, 64), (64, 128), (128, 256), (256, 512), (512, 512)]
    global_chs = local_chs + [(512, 512)]

    def conv_init(k, cin, cout):
        kw_, kb = jax.random.split(k)
        w = jax.random.normal(kw_, (cout, cin, 5, 5), jnp.float32) / jnp.sqrt(cin * 25.0)
        w_hwio = jnp.transpose(w, (2, 3, 1, 0))                    # (5,5,Cin,Cout)
        w_taps = w_hwio.reshape(25, cin, cout).astype(jnp.bfloat16)
        w6 = jnp.concatenate(
            [w_hwio, jnp.zeros((5, 1, cin, cout), w_hwio.dtype)], axis=1)
        w_pack = w6.reshape(5, 3, 2 * cin, cout).astype(jnp.bfloat16)
        b = (jax.random.normal(kb, (cout,), jnp.float32) * 0.01).reshape(1, cout)
        gamma = jnp.ones((1, cout), jnp.float32)   # BatchNorm2d default weight
        beta = jnp.zeros((1, cout), jnp.float32)   # BatchNorm2d default bias
        return w_taps, w_pack, b, gamma, beta

    keys = jax.random.split(key, len(local_chs) + len(global_chs) + 2)
    ki = 0
    for idx, (cin, cout) in enumerate(local_chs):
        params[f"local{idx + 1}"] = conv_init(keys[ki], cin, cout)
        ki += 1
    for idx, (cin, cout) in enumerate(global_chs):
        params[f"global{idx + 1}"] = conv_init(keys[ki], cin, cout)
        ki += 1

    kfc, kfcb = jax.random.split(keys[ki]); ki += 1
    params["fc"] = (
        (jax.random.normal(kfc, (8192, 1024), jnp.float32) / jnp.sqrt(8192.0)
         ).astype(jnp.bfloat16),
        jax.random.normal(kfcb, (1, 1024), jnp.float32) * 0.01,
    )
    kff, kffb = jax.random.split(keys[ki])
    params["final_fc"] = (
        jax.random.normal(kff, (2048, 1), jnp.float32) / jnp.sqrt(2048.0),
        jax.random.normal(kffb, (1, 1), jnp.float32) * 0.01,
    )
    return params


# ---------------------------------------------------------------------------
if __name__ == "__main__":
    key = jax.random.PRNGKey(0)
    kp, kl, kg = jax.random.split(key, 3)
    params = init_params(kp)

    # The module's fc expects 512*4*4 = 8192 features, so the local input is
    # 128x128 (5 stride-2 convs) and the global input is 256x256 (6 convs).
    local_x = jax.random.normal(kl, (2, 3, 128, 128), jnp.float32)
    global_x = jax.random.normal(kg, (2, 3, 256, 256), jnp.float32)

    out = discriminator_forward(params, local_x, global_x)
    out = jax.block_until_ready(out)

    assert out.shape == (2, 1)
    assert bool(jnp.all(jnp.isfinite(out)))
    assert bool(jnp.all((out >= 0.0) & (out <= 1.0)))   # sigmoid range
    print("KERNEL_OK")
</pallas_src>

<mosaic_0001>
module attributes {stable_mosaic.version = 11 : i64} {
  func.func @_mm_kernel(%arg0: i32, %arg1: i32, %arg2: i32, %arg3: memref<1024x128xbf16, #tpu.memory_space<vmem>>, %arg4: memref<128x64xbf16, #tpu.memory_space<vmem>>, %arg5: memref<1x64xf32, #tpu.memory_space<vmem>>, %arg6: memref<1024x64xbf16, #tpu.memory_space<vmem>>, %arg7: memref<1x1x64xf32, #tpu.memory_space<vmem>>, %arg8: memref<1x1x64xf32, #tpu.memory_space<vmem>>) attributes {dimension_semantics = [#tpu.dimension_semantics<parallel>, #tpu.dimension_semantics<parallel>, #tpu.dimension_semantics<arbitrary>], iteration_bounds = array<i64: 8, 1, 1>, scalar_prefetch = 0 : i64, scratch_operands = 0 : i64, tpu.core_type = #tpu.core_type<tc>, window_params = [{transform_indices = @transform_0, window_bounds = array<i64: 1024, 128>}, {transform_indices = @transform_1, window_bounds = array<i64: 128, 64>}, {transform_indices = @transform_2, window_bounds = array<i64: 1, 64>}, {transform_indices = @transform_3, window_bounds = array<i64: 1024, 64>}, {transform_indices = @transform_4, window_bounds = array<i64: 1, 1, 64>}, {transform_indices = @transform_5, window_bounds = array<i64: 1, 1, 64>}]} {
    %c0 = arith.constant 0 : index
    %c0_0 = arith.constant 0 : index
    %0 = vector.load %arg3[%c0, %c0_0] : memref<1024x128xbf16, #tpu.memory_space<vmem>>, vector<1024x128xbf16>
    %c0_1 = arith.constant 0 : index
    %c0_2 = arith.constant 0 : index
    %1 = vector.load %arg4[%c0_1, %c0_2] : memref<128x64xbf16, #tpu.memory_space<vmem>>, vector<128x64xbf16>
    %cst = arith.constant dense<0.000000e+00> : vector<1024x64xf32>
    %2 = tpu.matmul %0, %1, %cst {dimension_numbers = #tpu.dot_dimension_numbers<[1], [0], [0], [1], [0, 0, 1, 1], [], []>} : vector<1024x128xbf16>, vector<128x64xbf16>, vector<1024x64xf32> -> vector<1024x64xf32>
    %c0_3 = arith.constant 0 : index
    %c0_4 = arith.constant 0 : index
    %3 = vector.load %arg5[%c0_3, %c0_4] : memref<1x64xf32, #tpu.memory_space<vmem>>, vector<1x64xf32>
    %4 = vector.broadcast %3 : vector<1x64xf32> to vector<1024x64xf32>
    %5 = arith.addf %2, %4 : vector<1024x64xf32>
    %cst_5 = arith.constant 0.000000e+00 : f32
    %6 = vector.broadcast %cst_5 : f32 to vector<1024x64xf32>
    %7 = arith.maximumf %5, %6 : vector<1024x64xf32>
    %8 = arith.truncf %7 : vector<1024x64xf32> to vector<1024x64xbf16>
    %c0_6 = arith.constant 0 : index
    %c0_7 = arith.constant 0 : index
    %9 = vector.load %arg6[%c0_6, %c0_7] : memref<1024x64xbf16, #tpu.memory_space<vmem>>, vector<1024x64xbf16>
    tpu.vector_store %arg6[%c0_6, %c0_7], %8 {strides = array<i32>} : memref<1024x64xbf16, #tpu.memory_space<vmem>>, vector<1024x64xbf16>,
    %cst_8 = arith.constant dense<0.000000e+00> : vector<64xf32>
    %10 = vector.multi_reduction <add>, %7, %cst_8 [0] : vector<1024x64xf32> to vector<64xf32>
    %11 = vector.shape_cast %10 : vector<64xf32> to vector<1x1x64xf32>
    %c0_9 = arith.constant 0 : index
    %c0_10 = arith.constant 0 : index
    %c0_11 = arith.constant 0 : index
    %12 = vector.load %arg7[%c0_9, %c0_10, %c0_11] : memref<1x1x64xf32, #tpu.memory_space<vmem>>, vector<1x1x64xf32>
    tpu.vector_store %arg7[%c0_9, %c0_10, %c0_11], %11 {strides = array<i32>} : memref<1x1x64xf32, #tpu.memory_space<vmem>>, vector<1x1x64xf32>,
    %13 = arith.mulf %7, %7 : vector<1024x64xf32>
    %cst_12 = arith.constant dense<0.000000e+00> : vector<64xf32>
    %14 = vector.multi_reduction <add>, %13, %cst_12 [0] : vector<1024x64xf32> to vector<64xf32>
    %15 = vector.shape_cast %14 : vector<64xf32> to vector<1x1x64xf32>
    %c0_13 = arith.constant 0 : index
    %c0_14 = arith.constant 0 : index
    %c0_15 = arith.constant 0 : index
    %16 = vector.load %arg8[%c0_13, %c0_14, %c0_15] : memref<1x1x64xf32, #tpu.memory_space<vmem>>, vector<1x1x64xf32>
    tpu.vector_store %arg8[%c0_13, %c0_14, %c0_15], %15 {strides = array<i32>} : memref<1x1x64xf32, #tpu.memory_space<vmem>>, vector<1x1x64xf32>,
    return
  }
  func.func @transform_0(%arg0: i32, %arg1: i32, %arg2: i32) -> (i32, i32) {
    %c0_i32 = arith.constant 0 : i32
    return %arg0, %arg2 : i32, i32
  }
  func.func @transform_1(%arg0: i32, %arg1: i32, %arg2: i32) -> (i32, i32) {
    %c0_i32 = arith.constant 0 : i32
    return %arg2, %arg1 : i32, i32
  }
  func.func @transform_2(%arg0: i32, %arg1: i32, %arg2: i32) -> (i32, i32) {
    %c0_i32 = arith.constant 0 : i32
    %c0_i32_0 = arith.constant 0 : i32
    return %c0_i32, %arg1 : i32, i32
  }
  func.func @transform_3(%arg0: i32, %arg1: i32, %arg2: i32) -> (i32, i32) {
    %c0_i32 = arith.constant 0 : i32
    return %arg0, %arg1 : i32, i32
  }
  func.func @transform_4(%arg0: i32, %arg1: i32, %arg2: i32) -> (i32, i32, i32) {
    %c0_i32 = arith.constant 0 : i32
    %c0_i32_0 = arith.constant 0 : i32
    return %arg0, %c0_i32, %arg1 : i32, i32, i32
  }
  func.func @transform_5(%arg0: i32, %arg1: i32, %arg2: i32) -> (i32, i32, i32) {
    %c0_i32 = arith.constant 0 : i32
    %c0_i32_0 = arith.constant 0 : i32
    return %arg0, %c0_i32, %arg1 : i32, i32, i32
  }
}

</mosaic_0001>

<llo_original>
// kernel: tpu_custom_call.1
$region0: #{tpu_custom_call.1}
  #allocation0 [shape = 'u32[]', space=smem, size = 0x4, offset = 0x4, fixed_abs, tag = 'smem constant byte address 0x4 - core index']
  #allocation1 [shape = 'u32[144,128]{1,0:T(1,128)}', space=vmem, size = 0x12000, scoped, tag = 'internal scratch']
  %s0 = inlined_call_operand.hbm [shape: bf16[8192,128], index: 0, kind: input, shape index: {}]
  %s1 = inlined_call_operand.vmem [shape: bf16[128,64], index: 1, kind: input, shape index: {}]
  %s2 = inlined_call_operand.hbm [shape: f32[1,64], index: 2, kind: input, shape index: {}]
  %s3 = inlined_call_operand.vmem [shape: bf16[8192,64], index: 3, kind: output, shape index: {0}]
  %s4 = inlined_call_operand.hbm [shape: f32[8,1,64], index: 4, kind: output, shape index: {1}]
  %s5 = inlined_call_operand.hbm [shape: f32[8,1,64], index: 5, kind: output, shape index: {2}]
  %6 = xla_tuple %s3, %s4, %s5
  %s7 = sld [smem:[#allocation0]]
  $region69: #{tpu_custom_call.1} parent=0
    _
  %s9 = ssub.s32 1, %s7
  %s10 = scalar_select 0, %s9, %s7
  $region1: #{tpu_custom_call.1} parent=0
    #allocation2 [shape = 'u8[524288]{0}', space=vmem, size = 0x80000, scoped, tag = 'input window, operand 0']
    #allocation3 [shape = 's32[2]{0}', space=sflag, size = 0x8, scoped, tag = 'scoped memory for tpu_custom_call.1']
    #allocation4 [shape = 's32[2]{0}', space=sflag, size = 0x8, scoped, tag = 'scoped memory for tpu_custom_call.1']
    #allocation5 [shape = 'u8[512]{0}', space=vmem, size = 0x400, scoped, tag = 'input window, operand 2, single buffered']
    #allocation6 [shape = 's32[1]{0}', space=sflag, size = 0x4, scoped, tag = 'scoped memory for tpu_custom_call.1']
    #allocation7 [shape = 'u8[1024]{0}', space=vmem, size = 0x400, scoped, tag = 'output window, operand 1']
    #allocation8 [shape = 'u8[1024]{0}', space=vmem, size = 0x400, scoped, tag = 'output window, operand 2']
    #allocation9 [shape = 's32[2]{0}', space=sflag, size = 0x8, scoped, tag = 'scoped memory for tpu_custom_call.1']
    %11 = vsyncpa [#allocation3], 0
    %s12 = scalar_lea.sflag [#allocation3], 1
    %13 = vsyncpa %s12, 0
    %14 = vsyncpa [#allocation6], 0
    %15 = vsyncpa [#allocation4], 0
    %s16 = scalar_lea.sflag [#allocation4], 1
    %17 = vsyncpa %s16, 0
    %18 = vsyncpa [#allocation9], 0
    %s19 = scalar_lea.sflag [#allocation9], 1
    %20 = vsyncpa %s19, 0
    loop: start=0, step=1, limit=10
    $region2: #{tpu_custom_call.1} parent=1 // loop_pre_header
      _
    $region3: #{tpu_custom_call.1} parent=1 // loop_header
      %s22 = sphi 0, %s26
      %p23 = scmp.ge.s32.totalorder %s22, 10
      %s29 = sphi 0, %s48
      %s30 = sphi 0, %s44
      %s31 = sphi 0, %s40
      %s32 = sphi 0, %s29
      %s33 = sphi 0, %s30
      %s34 = sphi 0, %s31
      %s35 = sphi 0, %s32
      %s36 = sphi 0, %s33
      %s37 = sphi 0, %s34
      %s53 = sphi 0, %s55
      %s56 = sphi 0, %s53
      %s57 = sphi 0, %s56
      %s73 = sphi 0, %s57
      %s81 = sphi 0, %s83
      %s84 = sphi 0, %s81
      %s85 = sphi 0, %s84
      %s101 = sphi 0, %s85
      %s107 = sphi 0, %s109
      %s110 = sphi 0, %s107
      %s111 = sphi 0, %s110
      %s127 = sphi 0, %s111
      %s135 = sphi 0, %s137
      %s138 = sphi 0, %s135
      %s139 = sphi 0, %s138
      %s155 = sphi 0, %s139
      %s163 = sphi 0, %s165
      %s166 = sphi 0, %s163
      %s167 = sphi 0, %s166
      %s183 = sphi 0, %s167
      %s191 = sphi 0, %s193
      %s194 = sphi 0, %s191
      %s195 = sphi 0, %s194
      %s211 = sphi 0, %s195
    $region4: #{tpu_custom_call.1} parent=1 // loop_header_branch
      %25 = sbr.rel (%p23) target = $region8
    $region5: #{tpu_custom_call.1} parent=1 // loop_body
      %s27 = ssub.s32 %s22, 1
      %s28 = ssub.s32 %s22, 2
      %s38 = sadd.s32 1, %s31
      %p39 = scmp.ge.s32.totalorder %s38, 1
      %s40 = scalar_select %p39, 0, %s38
      %s41 = sadd.s32 1, %s30
      %s42 = scalar_select %p39, %s41, %s30
      %p43 = scmp.ge.s32.totalorder %s42, 1
      %s44 = scalar_select %p43, 0, %s42
      %s45 = sadd.s32 1, %s29
      %s46 = scalar_select %p43, %s45, %s29
      %p47 = scmp.ge.s32.totalorder %s46, 8
      %s48 = scalar_select %p47, 0, %s46
      %s49 = ssub.s32 %s29, %s48
      %s50 = ssub.s32 %s31, %s40
      %s51 = sor.u32 %s49, %s50
      %p52 = scmp.eq.s32.totalorder %s51, 0
      %s54 = sadd.s32 %s53, 1
      %s55 = scalar_select %p52, %s53, %s54
      %p58 = pneg %p52
      %p59 = scmp.eq.s32.totalorder %s22, 7
      %p60 = por %p58, %p59
      %p61 = scmp.ne.s32.totalorder %s53, %s56
      %p62 = scmp.eq.s32.totalorder %s22, 0
      %p63 = por %p61, %p62
      %p64 = scmp.ne.s32.totalorder %s53, %s56
      %p65 = scmp.eq.s32.totalorder %s27, 7
      %p66 = por %p64, %p65
      %p67 = scmp.ne.s32.totalorder %s56, %s57
      %p68 = scmp.eq.s32.totalorder %s27, 0
      %p69 = por %p67, %p68
      %p70 = scmp.ne.s32.totalorder %s56, %s57
      %p71 = scmp.eq.s32.totalorder %s28, 7
      %p72 = por %p70, %p71
      %p74 = scmp.ne.s32.totalorder %s57, %s73
      %p75 = scmp.eq.s32.totalorder %s28, 0
      %p76 = por %p74, %p75
      %s77 = ssub.s32 %s31, %s40
      %s78 = ssub.s32 %s30, %s44
      %s79 = sor.u32 %s77, %s78
      %p80 = scmp.eq.s32.totalorder %s79, 0
      %s82 = sadd.s32 %s81, 1
      %s83 = scalar_select %p80, %s81, %s82
      %p86 = pneg %p80
      %p87 = scmp.eq.s32.totalorder %s22, 7
      %p88 = por %p86, %p87
      %p89 = scmp.ne.s32.totalorder %s81, %s84
      %p90 = scmp.eq.s32.totalorder %s22, 0
      %p91 = por %p89, %p90
      %p92 = scmp.ne.s32.totalorder %s81, %s84
      %p93 = scmp.eq.s32.totalorder %s27, 7
      %p94 = por %p92, %p93
      %p95 = scmp.ne.s32.totalorder %s84, %s85
      %p96 = scmp.eq.s32.totalorder %s27, 0
      %p97 = por %p95, %p96
      %p98 = scmp.ne.s32.totalorder %s84, %s85
      %p99 = scmp.eq.s32.totalorder %s28, 7
      %p100 = por %p98, %p99
      %p102 = scmp.ne.s32.totalorder %s85, %s101
      %p103 = scmp.eq.s32.totalorder %s28, 0
      %p104 = por %p102, %p103
      %s105 = ssub.s32 %s30, %s44
      %p106 = scmp.eq.s32.totalorder %s105, 0
      %s108 = sadd.s32 %s107, 1
      %s109 = scalar_select %p106, %s107, %s108
      %p112 = pneg %p106
      %p113 = scmp.eq.s32.totalorder %s22, 7
      %p114 = por %p112, %p113
      %p115 = scmp.ne.s32.totalorder %s107, %s110
      %p116 = scmp.eq.s32.totalorder %s22, 0
      %p117 = por %p115, %p116
      %p118 = scmp.ne.s32.totalorder %s107, %s110
      %p119 = scmp.eq.s32.totalorder %s27, 7
      %p120 = por %p118, %p119
      %p121 = scmp.ne.s32.totalorder %s110, %s111
      %p122 = scmp.eq.s32.totalorder %s27, 0
      %p123 = por %p121, %p122
      %p124 = scmp.ne.s32.totalorder %s110, %s111
      %p125 = scmp.eq.s32.totalorder %s28, 7
      %p126 = por %p124, %p125
      %p128 = scmp.ne.s32.totalorder %s111, %s127
      %p129 = scmp.eq.s32.totalorder %s28, 0
      %p130 = por %p128, %p129
      %s131 = ssub.s32 %s29, %s48
      %s132 = ssub.s32 %s30, %s44
      %s133 = sor.u32 %s131, %s132
      %p134 = scmp.eq.s32.totalorder %s133, 0
      %s136 = sadd.s32 %s135, 1
      %s137 = scalar_select %p134, %s135, %s136
      %p140 = pneg %p134
      %p141 = scmp.eq.s32.totalorder %s22, 7
      %p142 = por %p140, %p141
      %p143 = scmp.ne.s32.totalorder %s135, %s138
      %p144 = scmp.eq.s32.totalorder %s22, 0
      %p145 = por %p143, %p144
      %p146 = scmp.ne.s32.totalorder %s135, %s138
      %p147 = scmp.eq.s32.totalorder %s27, 7
      %p148 = por %p146, %p147
      %p149 = scmp.ne.s32.totalorder %s138, %s139
      %p150 = scmp.eq.s32.totalorder %s27, 0
      %p151 = por %p149, %p150
      %p152 = scmp.ne.s32.totalorder %s138, %s139
      %p153 = scmp.eq.s32.totalorder %s28, 7
      %p154 = por %p152, %p153
      %p156 = scmp.ne.s32.totalorder %s139, %s155
      %p157 = scmp.eq.s32.totalorder %s28, 0
      %p158 = por %p156, %p157
      %s159 = ssub.s32 %s29, %s48
      %s160 = ssub.s32 %s30, %s44
      %s161 = sor.u32 %s159, %s160
      %p162 = scmp.eq.s32.totalorder %s161, 0
      %s164 = sadd.s32 %s163, 1
      %s165 = scalar_select %p162, %s163, %s164
      %p168 = pneg %p162
      %p169 = scmp.eq.s32.totalorder %s22, 7
      %p170 = por %p168, %p169
      %p171 = scmp.ne.s32.totalorder %s163, %s166
      %p172 = scmp.eq.s32.totalorder %s22, 0
      %p173 = por %p171, %p172
      %p174 = scmp.ne.s32.totalorder %s163, %s166
      %p175 = scmp.eq.s32.totalorder %s27, 7
      %p176 = por %p174, %p175
      %p177 = scmp.ne.s32.totalorder %s166, %s167
      %p178 = scmp.eq.s32.totalorder %s27, 0
      %p179 = por %p177, %p178
      %p180 = scmp.ne.s32.totalorder %s166, %s167
      %p181 = scmp.eq.s32.totalorder %s28, 7
      %p182 = por %p180, %p181
      %p184 = scmp.ne.s32.totalorder %s167, %s183
      %p185 = scmp.eq.s32.totalorder %s28, 0
      %p186 = por %p184, %p185
      %s187 = ssub.s32 %s29, %s48
      %s188 = ssub.s32 %s30, %s44
      %s189 = sor.u32 %s187, %s188
      %p190 = scmp.eq.s32.totalorder %s189, 0
      %s192 = sadd.s32 %s191, 1
      %s193 = scalar_select %p190, %s191, %s192
      %p196 = pneg %p190
      %p197 = scmp.eq.s32.totalorder %s22, 7
      %p198 = por %p196, %p197
      %p199 = scmp.ne.s32.totalorder %s191, %s194
      %p200 = scmp.eq.s32.totalorder %s22, 0
      %p201 = por %p199, %p200
      %p202 = scmp.ne.s32.totalorder %s191, %s194
      %p203 = scmp.eq.s32.totalorder %s27, 7
      %p204 = por %p202, %p203
      %p205 = scmp.ne.s32.totalorder %s194, %s195
      %p206 = scmp.eq.s32.totalorder %s27, 0
      %p207 = por %p205, %p206
      %p208 = scmp.ne.s32.totalorder %s194, %s195
      %p209 = scmp.eq.s32.totalorder %s28, 7
      %p210 = por %p208, %p209
      %p212 = scmp.ne.s32.totalorder %s195, %s211
      %p213 = scmp.eq.s32.totalorder %s28, 0
      %p214 = por %p212, %p213
      %p215 = scmp.le.s32.totalorder 1, %s22
      %p216 = scmp.lt.s32.totalorder %s22, 9
      %p217 = pnand %p215, %p216
      %p218 = pneg %p217
      // Predicated region
      $region9: #{tpu_custom_call.1} parent=5 // pred_check
        _
      $region10: #{tpu_custom_call.1} parent=5 // pred_check_branch
        %220 = sbr.rel (%p217) target = $region12
      $region11: #{tpu_custom_call.1} parent=5 // pred_region
        %s221 = ssub.s32 %s22, 1
        // Predicated region
        $region13: #{tpu_custom_call.1} parent=11 // pred_check
          %p222 = pneg %p97
        $region14: #{tpu_custom_call.1} parent=11 // pred_check_branch
          %224 = sbr.rel (%p222) target = $region16
        $region15: #{tpu_custom_call.1} parent=11 // pred_region
          %s225 = smul.u32 16, %s34
          %p226 = scmp.lt.s32.totalorder %s225, 15
          %s227 = scalar_select %p226, %s225, 15
          %p228 = scmp.lt.s32.totalorder %s33, 0
          %s229 = scalar_select %p228, %s33, 0
          %s230 = sadd.s32 %s229, %s227
          %s231 = smul.addr %s230, 4
          %s232 = scalar_lea.vmem %s1, %s231
          %s233 = smul.u32 16, %s34
        $region16: #{tpu_custom_call.1} parent=11 // pred_fallthru
          _
        // Predicated region
        $region17: #{tpu_custom_call.1} parent=11 // pred_check
          %p234 = pneg %p123
        $region18: #{tpu_custom_call.1} parent=11 // pred_check_branch
          %236 = sbr.rel (%p234) target = $region20
        $region19: #{tpu_custom_call.1} parent=11 // pred_region
          %s238 = ssub.s32 16, 16
          %239 = vsyncadd [#allocation6], %s238
          %s240 = smul.addr %s33, 16
          %s241 = scalar_lea.hbm %s2, %s240
          %s243 = sshll.u32 [#allocation5], 4
          %s244 = int_to_ptr.vmem [resolvable:$true] %s243
          %246 = dma.hbm_to_vmem [thread:$0]  %s241, 16, %s244, [#allocation6]
        $region20: #{tpu_custom_call.1} parent=11 // pred_fallthru
          _
      $region12: #{tpu_custom_call.1} parent=5 // pred_fallthru
        _
      %p247 = scmp.lt.s32.totalorder %s22, 8
      // Predicated region
      $region21: #{tpu_custom_call.1} parent=5 // pred_check
        %p248 = pneg %p247
      $region22: #{tpu_custom_call.1} parent=5 // pred_check_branch
        %250 = sbr.rel (%p248) target = $region24
      $region23: #{tpu_custom_call.1} parent=5 // pred_region
        // Predicated region
        $region25: #{tpu_custom_call.1} parent=23 // pred_check
          %p251 = pneg %p63
        $region26: #{tpu_custom_call.1} parent=23 // pred_check_branch
          %253 = sbr.rel (%p251) target = $region28
        $region27: #{tpu_custom_call.1} parent=23 // pred_region
          %s254 = sand.u32 %s53, 1
          %s255 = scalar_lea.sflag [#allocation3], %s254
          %s256 = sand.u32 %s53, 1
          %s257 = smul.addr %s256, 512
          %s258 = scalar_lea.vmem [#allocation2], %s257
          %s259 = smul.u32 128, %s29
          %s261 = ssub.s32 8192, 8192
          %262 = vsyncadd %s255, %s261
          %s263 = sadd.s32 %s31, %s259
          %s264 = smul.addr %s263, 64
          %s265 = scalar_lea.hbm %s0, %s264
          %s266 = sshll.u32 %s258, 4
          %s267 = int_to_ptr.vmem [resolvable:$true] %s266
          %272 = dma.hbm_to_vmem [thread:$0]  %s265, 8192, %s267, %s255, 64, 64, 4
        $region28: #{tpu_custom_call.1} parent=23 // pred_fallthru
          _
      $region24: #{tpu_custom_call.1} parent=5 // pred_fallthru
        _
      %p273 = scmp.le.s32.totalorder 1, %s22
      %p274 = scmp.lt.s32.totalorder %s22, 9
      %p275 = pnand %p273, %p274
      %p276 = pneg %p275
      // Predicated region
      $region29: #{tpu_custom_call.1} parent=5 // pred_check
        _
      $region30: #{tpu_custom_call.1} parent=5 // pred_check_branch
        %278 = sbr.rel (%p275) target = $region32
      $region31: #{tpu_custom_call.1} parent=5 // pred_region
        %s279 = ssub.s32 %s22, 1
        %s280 = sand.u32 %s56, 1
        %s281 = scalar_lea.sflag [#allocation3], %s280
        %s282 = sand.u32 %s56, 1
        %s283 = smul.addr %s282, 512
        %s284 = scalar_lea.vmem [#allocation2], %s283
        // Predicated region
        $region33: #{tpu_custom_call.1} parent=31 // pred_check
          %p285 = pneg %p69
        $region34: #{tpu_custom_call.1} parent=31 // pred_check_branch
          %287 = sbr.rel (%p285) target = $region36
        $region35: #{tpu_custom_call.1} parent=31 // pred_region
          %288 = dma.done %s281, 8192
        $region36: #{tpu_custom_call.1} parent=31 // pred_fallthru
          _
        // Predicated region
        $region37: #{tpu_custom_call.1} parent=31 // pred_check
          %p289 = pneg %p123
        $region38: #{tpu_custom_call.1} parent=31 // pred_check_branch
          %291 = sbr.rel (%p289) target = $region40
        $region39: #{tpu_custom_call.1} parent=31 // pred_region
          %292 = dma.done [#allocation6], 16
        $region40: #{tpu_custom_call.1} parent=31 // pred_fallthru
          _
        %s293 = sand.u32 %s56, 1
        %s294 = scalar_lea.sflag [#allocation3], %s293
        %s295 = sand.u32 %s56, 1
        %s296 = smul.addr %s295, 512
        %s297 = scalar_lea.vmem [#allocation2], %s296
        %p298 = pneg %p69
        %p299 = pneg %p66
        %s300 = smul.u32 16, %s34
        %p301 = scmp.lt.s32.totalorder %s300, 15
        %s302 = scalar_select %p301, %s300, 15
        %p303 = scmp.lt.s32.totalorder %s33, 0
        %s304 = scalar_select %p303, %s33, 0
        %s305 = sadd.s32 %s304, %s302
        %s306 = smul.addr %s305, 4
        %s307 = scalar_lea.vmem %s1, %s306
        %p308 = pneg %p97
        %p309 = pneg %p94
        %p310 = pneg %p123
        %p311 = pneg %p120
        %p312 = pneg %p151
        %p313 = pneg %p148
        %s314 = smul.u32 128, %s32
        %p315 = scmp.lt.s32.totalorder %s314, 1023
        %s316 = scalar_select %p315, %s314, 1023
        %p317 = scmp.lt.s32.totalorder %s33, 0
        %s318 = scalar_select %p317, %s33, 0
        %s319 = sadd.s32 %s318, %s316
        %s320 = smul.addr %s319, 4
        %s321 = scalar_lea.vmem %s3, %s320
        %p322 = pneg %p179
        %p323 = pneg %p176
        %s324 = sand.u32 %s166, 1
        %s325 = scalar_lea.sflag [#allocation4], %s324
        %s326 = sand.u32 %s166, 1
        %s327 = scalar_lea.vmem [#allocation7], %s326
        %p328 = pneg %p207
        %p329 = pneg %p204
        %s330 = sand.u32 %s194, 1
        %s331 = scalar_lea.sflag [#allocation9], %s330
        %s332 = sand.u32 %s194, 1
        %s333 = scalar_lea.vmem [#allocation8], %s332
        %s334 = smul.u32 128, %s32
        %s335 = smul.u32 16, %s34
        %p336 = scmp.lt.s32.totalorder %s335, 15
        %s337 = scalar_select %p336, %s335, 15
        %p338 = scmp.lt.s32.totalorder %s33, 0
        %s339 = scalar_select %p338, %s33, 0
        %s340 = sadd.s32 %s339, %s337
        %s341 = smul.addr %s340, 4
        %s342 = scalar_lea.vmem %s1, %s341
        %s343 = smul.u32 16, %s34
        %s344 = smul.u32 128, %s32
        %p345 = scmp.lt.s32.totalorder %s344, 1023
        %s346 = scalar_select %p345, %s344, 1023
        %p347 = scmp.lt.s32.totalorder %s33, 0
        %s348 = scalar_select %p347, %s33, 0
        %s349 = sadd.s32 %s348, %s346
        %s350 = smul.addr %s349, 4
        %s351 = scalar_lea.vmem %s3, %s350
        %s352 = smul.u32 128, %s32
        %v354 = vld [vmem:[%s284] sm:$0xf]
        %v355 = vld [vmem:[%s284 + $0x4] sm:$0xf]
        %v356 = vld [vmem:[%s284 + $0x8] sm:$0xf]
        %v357 = vld [vmem:[%s284 + $0xc] sm:$0xf]
        %v358 = vld [vmem:[%s284 + $0x10] sm:$0xf]
        %v359 = vld [vmem:[%s284 + $0x14] sm:$0xf]
        %v360 = vld [vmem:[%s284 + $0x18] sm:$0xf]
        %v361 = vld [vmem:[%s284 + $0x1c] sm:$0xf]
        %v362 = vld [vmem:[%s284 + $0x20] sm:$0xf]
        %v363 = vld [vmem:[%s284 + $0x24] sm:$0xf]
        %v364 = vld [vmem:[%s284 + $0x28] sm:$0xf]
        %v365 = vld [vmem:[%s284 + $0x2c] sm:$0xf]
        %v366 = vld [vmem:[%s284 + $0x30] sm:$0xf]
        %v367 = vld [vmem:[%s284 + $0x34] sm:$0xf]
        %v368 = vld [vmem:[%s284 + $0x38] sm:$0xf]
        %v369 = vld [vmem:[%s284 + $0x3c] sm:$0xf]
        %v370 = vld [vmem:[%s284 + $0x40] sm:$0xf]
        %v371 = vld [vmem:[%s284 + $0x44] sm:$0xf]
        %v372 = vld [vmem:[%s284 + $0x48] sm:$0xf]
        %v373 = vld [vmem:[%s284 + $0x4c] sm:$0xf]
        %v374 = vld [vmem:[%s284 + $0x50] sm:$0xf]
        %v375 = vld [vmem:[%s284 + $0x54] sm:$0xf]
        %v376 = vld [vmem:[%s284 + $0x58] sm:$0xf]
        %v377 = vld [vmem:[%s284 + $0x5c] sm:$0xf]
        %v378 = vld [vmem:[%s284 + $0x60] sm:$0xf]
        %v379 = vld [vmem:[%s284 + $0x64] sm:$0xf]
        %v380 = vld [vmem:[%s284 + $0x68] sm:$0xf]
        %v381 = vld [vmem:[%s284 + $0x6c] sm:$0xf]
        %v382 = vld [vmem:[%s284 + $0x70] sm:$0xf]
        %v383 = vld [vmem:[%s284 + $0x74] sm:$0xf]
        %v384 = vld [vmem:[%s284 + $0x78] sm:$0xf]
        %v385 = vld [vmem:[%s284 + $0x7c] sm:$0xf]
        %v386 = vld [vmem:[%s284 + $0x80] sm:$0xf]
        %v387 = vld [vmem:[%s284 + $0x84] sm:$0xf]
        %v388 = vld [vmem:[%s284 + $0x88] sm:$0xf]
        %v389 = vld [vmem:[%s284 + $0x8c] sm:$0xf]
        %v390 = vld [vmem:[%s284 + $0x90] sm:$0xf]
        %v391 = vld [vmem:[%s284 + $0x94] sm:$0xf]
        %v392 = vld [vmem:[%s284 + $0x98] sm:$0xf]
        %v393 = vld [vmem:[%s284 + $0x9c] sm:$0xf]
        %v394 = vld [vmem:[%s284 + $0xa0] sm:$0xf]
        %v395 = vld [vmem:[%s284 + $0xa4] sm:$0xf]
        %v396 = vld [vmem:[%s284 + $0xa8] sm:$0xf]
        %v397 = vld [vmem:[%s284 + $0xac] sm:$0xf]
        %v398 = vld [vmem:[%s284 + $0xb0] sm:$0xf]
        %v399 = vld [vmem:[%s284 + $0xb4] sm:$0xf]
        %v400 = vld [vmem:[%s284 + $0xb8] sm:$0xf]
        %v401 = vld [vmem:[%s284 + $0xbc] sm:$0xf]
        %v402 = vld [vmem:[%s284 + $0xc0] sm:$0xf]
        %v403 = vld [vmem:[%s284 + $0xc4] sm:$0xf]
        %v404 = vld [vmem:[%s284 + $0xc8] sm:$0xf]
        %v405 = vld [vmem:[%s284 + $0xcc] sm:$0xf]
        %v406 = vld [vmem:[%s284 + $0xd0] sm:$0xf]
        %v407 = vld [vmem:[%s284 + $0xd4] sm:$0xf]
        %v408 = vld [vmem:[%s284 + $0xd8] sm:$0xf]
        %v409 = vld [vmem:[%s284 + $0xdc] sm:$0xf]
        %v410 = vld [vmem:[%s284 + $0xe0] sm:$0xf]
        %v411 = vld [vmem:[%s284 + $0xe4] sm:$0xf]
        %v412 = vld [vmem:[%s284 + $0xe8] sm:$0xf]
        %v413 = vld [vmem:[%s284 + $0xec] sm:$0xf]
        %v414 = vld [vmem:[%s284 + $0xf0] sm:$0xf]
        %v415 = vld [vmem:[%s284 + $0xf4] sm:$0xf]
        %v416 = vld [vmem:[%s284 + $0xf8] sm:$0xf]
        %v417 = vld [vmem:[%s284 + $0xfc] sm:$0xf]
        %v418 = vld [vmem:[%s284 + $0x100] sm:$0xf]
        %v419 = vld [vmem:[%s284 + $0x104] sm:$0xf]
        %v420 = vld [vmem:[%s284 + $0x108] sm:$0xf]
        %v421 = vld [vmem:[%s284 + $0x10c] sm:$0xf]
        %v422 = vld [vmem:[%s284 + $0x110] sm:$0xf]
        %v423 = vld [vmem:[%s284 + $0x114] sm:$0xf]
        %v424 = vld [vmem:[%s284 + $0x118] sm:$0xf]
        %v425 = vld [vmem:[%s284 + $0x11c] sm:$0xf]
        %v426 = vld [vmem:[%s284 + $0x120] sm:$0xf]
        %v427 = vld [vmem:[%s284 + $0x124] sm:$0xf]
        %v428 = vld [vmem:[%s284 + $0x128] sm:$0xf]
        %v429 = vld [vmem:[%s284 + $0x12c] sm:$0xf]
        %v430 = vld [vmem:[%s284 + $0x130] sm:$0xf]
        %v431 = vld [vmem:[%s284 + $0x134] sm:$0xf]
        %v432 = vld [vmem:[%s284 + $0x138] sm:$0xf]
        %v433 = vld [vmem:[%s284 + $0x13c] sm:$0xf]
        %v434 = vld [vmem:[%s284 + $0x140] sm:$0xf]
        %v435 = vld [vmem:[%s284 + $0x144] sm:$0xf]
        %v436 = vld [vmem:[%s284 + $0x148] sm:$0xf]
        %v437 = vld [vmem:[%s284 + $0x14c] sm:$0xf]
        %v438 = vld [vmem:[%s284 + $0x150] sm:$0xf]
        %v439 = vld [vmem:[%s284 + $0x154] sm:$0xf]
        %v440 = vld [vmem:[%s284 + $0x158] sm:$0xf]
        %v441 = vld [vmem:[%s284 + $0x15c] sm:$0xf]
        %v442 = vld [vmem:[%s284 + $0x160] sm:$0xf]
        %v443 = vld [vmem:[%s284 + $0x164] sm:$0xf]
        %v444 = vld [vmem:[%s284 + $0x168] sm:$0xf]
        %v445 = vld [vmem:[%s284 + $0x16c] sm:$0xf]
        %v446 = vld [vmem:[%s284 + $0x170] sm:$0xf]
        %v447 = vld [vmem:[%s284 + $0x174] sm:$0xf]
        %v448 = vld [vmem:[%s284 + $0x178] sm:$0xf]
        %v449 = vld [vmem:[%s284 + $0x17c] sm:$0xf]
        %v450 = vld [vmem:[%s284 + $0x180] sm:$0xf]
        %v451 = vld [vmem:[%s284 + $0x184] sm:$0xf]
        %v452 = vld [vmem:[%s284 + $0x188] sm:$0xf]
        %v453 = vld [vmem:[%s284 + $0x18c] sm:$0xf]
        %v454 = vld [vmem:[%s284 + $0x190] sm:$0xf]
        %v455 = vld [vmem:[%s284 + $0x194] sm:$0xf]
        %v456 = vld [vmem:[%s284 + $0x198] sm:$0xf]
        %v457 = vld [vmem:[%s284 + $0x19c] sm:$0xf]
        %v458 = vld [vmem:[%s284 + $0x1a0] sm:$0xf]
        %v459 = vld [vmem:[%s284 + $0x1a4] sm:$0xf]
        %v460 = vld [vmem:[%s284 + $0x1a8] sm:$0xf]
        %v461 = vld [vmem:[%s284 + $0x1ac] sm:$0xf]
        %v462 = vld [vmem:[%s284 + $0x1b0] sm:$0xf]
        %v463 = vld [vmem:[%s284 + $0x1b4] sm:$0xf]
        %v464 = vld [vmem:[%s284 + $0x1b8] sm:$0xf]
        %v465 = vld [vmem:[%s284 + $0x1bc] sm:$0xf]
        %v466 = vld [vmem:[%s284 + $0x1c0] sm:$0xf]
        %v467 = vld [vmem:[%s284 + $0x1c4] sm:$0xf]
        %v468 = vld [vmem:[%s284 + $0x1c8] sm:$0xf]
        %v469 = vld [vmem:[%s284 + $0x1cc] sm:$0xf]
        %v470 = vld [vmem:[%s284 + $0x1d0] sm:$0xf]
        %v471 = vld [vmem:[%s284 + $0x1d4] sm:$0xf]
        %v472 = vld [vmem:[%s284 + $0x1d8] sm:$0xf]
        %v473 = vld [vmem:[%s284 + $0x1dc] sm:$0xf]
        %v474 = vld [vmem:[%s284 + $0x1e0] sm:$0xf]
        %v475 = vld [vmem:[%s284 + $0x1e4] sm:$0xf]
        %v476 = vld [vmem:[%s284 + $0x1e8] sm:$0xf]
        %v477 = vld [vmem:[%s284 + $0x1ec] sm:$0xf]
        %v478 = vld [vmem:[%s284 + $0x1f0] sm:$0xf]
        %v479 = vld [vmem:[%s284 + $0x1f4] sm:$0xf]
        %v480 = vld [vmem:[%s284 + $0x1f8] sm:$0xf]
        %v481 = vld [vmem:[%s284 + $0x1fc] sm:$0xf]
        %v482 = vld [vmem:[%s342] sm:$0xf]
        %v483 = vld [vmem:[%s342 + $0x4] sm:$0xf]
        %v484 = vld [vmem:[%s342 + $0x8] sm:$0xf]
        %v485 = vld [vmem:[%s342 + $0xc] sm:$0xf]
        %v486 = vld [vmem:[%s342 + $0x10] sm:$0xf]
        %v487 = vld [vmem:[%s342 + $0x14] sm:$0xf]
        %v488 = vld [vmem:[%s342 + $0x18] sm:$0xf]
        %v489 = vld [vmem:[%s342 + $0x1c] sm:$0xf]
        %v490 = vld [vmem:[%s342 + $0x20] sm:$0xf]
        %v491 = vld [vmem:[%s342 + $0x24] sm:$0xf]
        %v492 = vld [vmem:[%s342 + $0x28] sm:$0xf]
        %v493 = vld [vmem:[%s342 + $0x2c] sm:$0xf]
        %v494 = vld [vmem:[%s342 + $0x30] sm:$0xf]
        %v495 = vld [vmem:[%s342 + $0x34] sm:$0xf]
        %v496 = vld [vmem:[%s342 + $0x38] sm:$0xf]
        %v497 = vld [vmem:[%s342 + $0x3c] sm:$0xf]
        %v498 = vld [vmem:[#allocation5] sm:$0x1]
        %v500 = vlaneseq
        %v501 = vshrl.u32 %v500, 7
        %v502 = vsub.s32 0, %v501
        %v503 = vrot.slane %v498, %v502
        %v633 = vunpack.c.l.b16 %v354
        %v634 = vunpack.c.l.b16 %v355
        %v635 = vunpack.c.l.b16 %v356
        %v636 = vunpack.c.l.b16 %v357
        %v637 = vunpack.c.l.b16 %v358
        %v638 = vunpack.c.l.b16 %v359
        %v639 = vunpack.c.l.b16 %v360
        %v640 = vunpack.c.l.b16 %v361
        %v641 = vunpack.c.l.b16 %v362
        %v642 = vunpack.c.l.b16 %v363
        %v643 = vunpack.c.l.b16 %v364
        %v644 = vunpack.c.l.b16 %v365
        %v645 = vunpack.c.l.b16 %v366
        %v646 = vunpack.c.l.b16 %v367
        %v647 = vunpack.c.l.b16 %v368
        %v648 = vunpack.c.l.b16 %v369
        %v649 = vunpack.c.l.b16 %v370
        %v650 = vunpack.c.l.b16 %v371
        %v651 = vunpack.c.l.b16 %v372
        %v652 = vunpack.c.l.b16 %v373
        %v653 = vunpack.c.l.b16 %v374
        %v654 = vunpack.c.l.b16 %v375
        %v655 = vunpack.c.l.b16 %v376
        %v656 = vunpack.c.l.b16 %v377
        %v657 = vunpack.c.l.b16 %v378
        %v658 = vunpack.c.l.b16 %v379
        %v659 = vunpack.c.l.b16 %v380
        %v660 = vunpack.c.l.b16 %v381
        %v661 = vunpack.c.l.b16 %v382
        %v662 = vunpack.c.l.b16 %v383
        %v663 = vunpack.c.l.b16 %v384
        %v664 = vunpack.c.l.b16 %v385
        %v665 = vunpack.c.l.b16 %v386
        %v666 = vunpack.c.l.b16 %v387
        %v667 = vunpack.c.l.b16 %v388
        %v668 = vunpack.c.l.b16 %v389
        %v669 = vunpack.c.l.b16 %v390
        %v670 = vunpack.c.l.b16 %v391
        %v671 = vunpack.c.l.b16 %v392
        %v672 = vunpack.c.l.b16 %v393
        %v673 = vunpack.c.l.b16 %v394
        %v674 = vunpack.c.l.b16 %v395
        %v675 = vunpack.c.l.b16 %v396
        %v676 = vunpack.c.l.b16 %v397
        %v677 = vunpack.c.l.b16 %v398
        %v678 = vunpack.c.l.b16 %v399
        %v679 = vunpack.c.l.b16 %v400
        %v680 = vunpack.c.l.b16 %v401
        %v681 = vunpack.c.l.b16 %v402
        %v682 = vunpack.c.l.b16 %v403
        %v683 = vunpack.c.l.b16 %v404
        %v684 = vunpack.c.l.b16 %v405
        %v685 = vunpack.c.l.b16 %v406
        %v686 = vunpack.c.l.b16 %v407
        %v687 = vunpack.c.l.b16 %v408
        %v688 = vunpack.c.l.b16 %v409
        %v689 = vunpack.c.l.b16 %v410
        %v690 = vunpack.c.l.b16 %v411
        %v691 = vunpack.c.l.b16 %v412
        %v692 = vunpack.c.l.b16 %v413
        %v693 = vunpack.c.l.b16 %v414
        %v694 = vunpack.c.l.b16 %v415
        %v695 = vunpack.c.l.b16 %v416
        %v696 = vunpack.c.l.b16 %v417
        %v697 = vunpack.c.l.b16 %v418
        %v698 = vunpack.c.l.b16 %v419
        %v699 = vunpack.c.l.b16 %v420
        %v700 = vunpack.c.l.b16 %v421
        %v701 = vunpack.c.l.b16 %v422
        %v702 = vunpack.c.l.b16 %v423
        %v703 = vunpack.c.l.b16 %v424
        %v704 = vunpack.c.l.b16 %v425
        %v705 = vunpack.c.l.b16 %v426
        %v706 = vunpack.c.l.b16 %v427
        %v707 = vunpack.c.l.b16 %v428
        %v708 = vunpack.c.l.b16 %v429
        %v709 = vunpack.c.l.b16 %v430
        %v710 = vunpack.c.l.b16 %v431
        %v711 = vunpack.c.l.b16 %v432
        %v712 = vunpack.c.l.b16 %v433
        %v713 = vunpack.c.l.b16 %v434
        %v714 = vunpack.c.l.b16 %v435
        %v715 = vunpack.c.l.b16 %v436
        %v716 = vunpack.c.l.b16 %v437
        %v717 = vunpack.c.l.b16 %v438
        %v718 = vunpack.c.l.b16 %v439
        %v719 = vunpack.c.l.b16 %v440
        %v720 = vunpack.c.l.b16 %v441
        %v721 = vunpack.c.l.b16 %v442
        %v722 = vunpack.c.l.b16 %v443
        %v723 = vunpack.c.l.b16 %v444
        %v724 = vunpack.c.l.b16 %v445
        %v725 = vunpack.c.l.b16 %v446
        %v726 = vunpack.c.l.b16 %v447
        %v727 = vunpack.c.l.b16 %v448
        %v728 = vunpack.c.l.b16 %v449
        %v729 = vunpack.c.l.b16 %v450
        %v730 = vunpack.c.l.b16 %v451
        %v731 = vunpack.c.l.b16 %v452
        %v732 = vunpack.c.l.b16 %v453
        %v733 = vunpack.c.l.b16 %v454
        %v734 = vunpack.c.l.b16 %v455
        %v735 = vunpack.c.l.b16 %v456
        %v736 = vunpack.c.l.b16 %v457
        %v737 = vunpack.c.l.b16 %v458
        %v738 = vunpack.c.l.b16 %v459
        %v739 = vunpack.c.l.b16 %v460
        %v740 = vunpack.c.l.b16 %v461
        %v741 = vunpack.c.l.b16 %v462
        %v742 = vunpack.c.l.b16 %v463
        %v743 = vunpack.c.l.b16 %v464
        %v744 = vunpack.c.l.b16 %v465
        %v745 = vunpack.c.l.b16 %v466
        %v746 = vunpack.c.l.b16 %v467
        %v747 = vunpack.c.l.b16 %v468
        %v748 = vunpack.c.l.b16 %v469
        %v749 = vunpack.c.l.b16 %v470
        %v750 = vunpack.c.l.b16 %v471
        %v751 = vunpack.c.l.b16 %v472
        %v752 = vunpack.c.l.b16 %v473
        %v753 = vunpack.c.l.b16 %v474
        %v754 = vunpack.c.l.b16 %v475
        %v755 = vunpack.c.l.b16 %v476
        %v756 = vunpack.c.l.b16 %v477
        %v757 = vunpack.c.l.b16 %v478
        %v758 = vunpack.c.l.b16 %v479
        %v759 = vunpack.c.l.b16 %v480
        %v760 = vunpack.c.l.b16 %v481
        %v761 = vpack.c.b16 %v634, %v633
        %v762 = vpack.c.b16 %v636, %v635
        %v763 = vpack.c.b16 %v638, %v637
        %v764 = vpack.c.b16 %v640, %v639
        %v765 = vpack.c.b16 %v642, %v641
        %v766 = vpack.c.b16 %v644, %v643
        %v767 = vpack.c.b16 %v646, %v645
        %v768 = vpack.c.b16 %v648, %v647
        %v769 = vpack.c.b16 %v650, %v649
        %v770 = vpack.c.b16 %v652, %v651
        %v771 = vpack.c.b16 %v654, %v653
        %v772 = vpack.c.b16 %v656, %v655
        %v773 = vpack.c.b16 %v658, %v657
        %v774 = vpack.c.b16 %v660, %v659
        %v775 = vpack.c.b16 %v662, %v661
        %v776 = vpack.c.b16 %v664, %v663
        %v777 = vpack.c.b16 %v666, %v665
        %v778 = vpack.c.b16 %v668, %v667
        %v779 = vpack.c.b16 %v670, %v669
        %v780 = vpack.c.b16 %v672, %v671
        %v781 = vpack.c.b16 %v674, %v673
        %v782 = vpack.c.b16 %v676, %v675
        %v783 = vpack.c.b16 %v678, %v677
        %v784 = vpack.c.b16 %v680, %v679
        %v785 = vpack.c.b16 %v682, %v681
        %v786 = vpack.c.b16 %v684, %v683
        %v787 = vpack.c.b16 %v686, %v685
        %v788 = vpack.c.b16 %v688, %v687
        %v789 = vpack.c.b16 %v690, %v689
        %v790 = vpack.c.b16 %v692, %v691
        %v791 = vpack.c.b16 %v694, %v693
        %v792 = vpack.c.b16 %v696, %v695
        %v793 = vpack.c.b16 %v698, %v697
        %v794 = vpack.c.b16 %v700, %v699
        %v795 = vpack.c.b16 %v702, %v701
        %v796 = vpack.c.b16 %v704, %v703
        %v797 = vpack.c.b16 %v706, %v705
        %v798 = vpack.c.b16 %v708, %v707
        %v799 = vpack.c.b16 %v710, %v709
        %v800 = vpack.c.b16 %v712, %v711
        %v801 = vpack.c.b16 %v714, %v713
        %v802 = vpack.c.b16 %v716, %v715
        %v803 = vpack.c.b16 %v718, %v717
        %v804 = vpack.c.b16 %v720, %v719
        %v805 = vpack.c.b16 %v722, %v721
        %v806 = vpack.c.b16 %v724, %v723
        %v807 = vpack.c.b16 %v726, %v725
        %v808 = vpack.c.b16 %v728, %v727
        %v809 = vpack.c.b16 %v730, %v729
        %v810 = vpack.c.b16 %v732, %v731
        %v811 = vpack.c.b16 %v734, %v733
        %v812 = vpack.c.b16 %v736, %v735
        %v813 = vpack.c.b16 %v738, %v737
        %v814 = vpack.c.b16 %v740, %v739
        %v815 = vpack.c.b16 %v742, %v741
        %v816 = vpack.c.b16 %v744, %v743
        %v817 = vpack.c.b16 %v746, %v745
        %v818 = vpack.c.b16 %v748, %v747
        %v819 = vpack.c.b16 %v750, %v749
        %v820 = vpack.c.b16 %v752, %v751
        %v821 = vpack.c.b16 %v754, %v753
        %v822 = vpack.c.b16 %v756, %v755
        %v823 = vpack.c.b16 %v758, %v757
        %v824 = vpack.c.b16 %v760, %v759
        %v905 = vunpack.c.l.b16 %v482
        %v906 = vunpack.c.l.b16 %v483
        %v907 = vunpack.c.l.b16 %v484
        %v908 = vunpack.c.l.b16 %v485
        %v909 = vunpack.c.l.b16 %v486
        %v910 = vunpack.c.l.b16 %v487
        %v911 = vunpack.c.l.b16 %v488
        %v912 = vunpack.c.l.b16 %v489
        %v913 = vunpack.c.l.b16 %v490
        %v914 = vunpack.c.l.b16 %v491
        %v915 = vunpack.c.l.b16 %v492
        %v916 = vunpack.c.l.b16 %v493
        %v917 = vunpack.c.l.b16 %v494
        %v918 = vunpack.c.l.b16 %v495
        %v919 = vunpack.c.l.b16 %v496
        %v920 = vunpack.c.l.b16 %v497
        %v921 = vpack.c.b16 %v906, %v905
        %v922 = vpack.c.b16 %v908, %v907
        %v923 = vpack.c.b16 %v910, %v909
        %v924 = vpack.c.b16 %v912, %v911
        %v925 = vpack.c.b16 %v914, %v913
        %v926 = vpack.c.b16 %v916, %v915
        %v927 = vpack.c.b16 %v918, %v917
        %v928 = vpack.c.b16 %v920, %v919
        %937 = vmatprep.subr.bf16.mxu0 0
        %938 = vmatpush1.bf16.msra.mxu0 %v921
        %939 = vmatprep.subr.bf16.mxu0 0
        %940 = vmatpush1.bf16.msra.mxu0 %v922
        %941 = vmatprep.subr.bf16.mxu0 0
        %942 = vmatpush1.bf16.msra.mxu0 %v923
        %943 = vmatprep.subr.bf16.mxu0 0
        %944 = vmatpush1.bf16.msra.mxu0 %v924
        %945 = vmatprep.subr.bf16.mxu0 0
        %946 = vmatpush1.bf16.msra.mxu0 %v925
        %947 = vmatprep.subr.bf16.mxu0 0
        %948 = vmatpush1.bf16.msra.mxu0 %v926
        %949 = vmatprep.subr.bf16.mxu0 0
        %950 = vmatpush1.bf16.msra.mxu0 %v927
        %951 = vmatprep.subr.bf16.mxu0 0
        %952 = vmatpush1.bf16.msra.mxu0 %v928
        %953 = vmatprep.subr.bf16.mxu0 0
        %954 = vmatpush1.bf16.msra.mxu0 0
        %955 = vmatprep.subr.bf16.mxu0 0
        %956 = vmatpush1.bf16.msra.mxu0 0
        %957 = vmatprep.subr.bf16.mxu0 0
        %958 = vmatpush1.bf16.msra.mxu0 0
        %959 = vmatprep.subr.bf16.mxu0 0
        %960 = vmatpush1.bf16.msra.mxu0 0
        %961 = vmatprep.subr.bf16.mxu0 0
        %962 = vmatpush1.bf16.msra.mxu0 0
        %963 = vmatprep.subr.bf16.mxu0 0
        %964 = vmatpush1.bf16.msra.mxu0 0
        %965 = vmatprep.subr.bf16.mxu0 0
        %966 = vmatpush1.bf16.msra.mxu0 0
        %967 = vmatprep.subr.bf16.mxu0 0
        %968 = vmatpush1.bf16.msra.mxu0 0
        %969 = vmatprep.mubr.bf16.mxu0 0
        %970 = vmatmul.mubr.bf16.gmra.mrb[0].mxu0 %v761
        %v971 = vpop.f32.mrb[0].mxu0
        %v972 = vadd.f32 %v503, %v971
        %v973 = vpop.f32.mrb[0].mxu0
        %v974 = vpop.f32.mrb[0].mxu0
        %v975 = vadd.f32 %v503, %v974
        %v976 = vpop.f32.mrb[0].mxu0
        %977 = vmatprep.mubr.bf16.mxu0 0
        %978 = vmatmul.mubr.bf16.gmra.mrb[0].mxu0 %v762
        %v979 = vpop.f32.mrb[0].mxu0
        %v980 = vadd.f32 %v503, %v979
        %v981 = vpop.f32.mrb[0].mxu0
        %v982 = vpop.f32.mrb[0].mxu0
        %v983 = vadd.f32 %v503, %v982
        %v984 = vpop.f32.mrb[0].mxu0
        %985 = vmatprep.mubr.bf16.mxu0 0
        %986 = vmatmul.mubr.bf16.gmra.mrb[0].mxu0 %v763
        %v987 = vpop.f32.mrb[0].mxu0
        %v988 = vadd.f32 %v503, %v987
        %v989 = vpop.f32.mrb[0].mxu0
        %v990 = vpop.f32.mrb[0].mxu0
        %v991 = vadd.f32 %v503, %v990
        %v992 = vpop.f32.mrb[0].mxu0
        %993 = vmatprep.mubr.bf16.mxu0 0
        %994 = vmatmul.mubr.bf16.gmra.mrb[0].mxu0 %v764
        %v995 = vpop.f32.mrb[0].mxu0
        %v996 = vadd.f32 %v503, %v995
        %v997 = vpop.f32.mrb[0].mxu0
        %v998 = vpop.f32.mrb[0].mxu0
        %v999 = vadd.f32 %v503, %v998
        %v1000 = vpop.f32.mrb[0].mxu0
        %1001 = vmatprep.mubr.bf16.mxu0 0
        %1002 = vmatmul.mubr.bf16.gmra.mrb[0].mxu0 %v765
        %v1003 = vpop.f32.mrb[0].mxu0
        %v1004 = vadd.f32 %v503, %v1003
        %v1005 = vpop.f32.mrb[0].mxu0
        %v1006 = vpop.f32.mrb[0].mxu0
        %v1007 = vadd.f32 %v503, %v1006
        %v1008 = vpop.f32.mrb[0].mxu0
        %1009 = vmatprep.mubr.bf16.mxu0 0
        %1010 = vmatmul.mubr.bf16.gmra.mrb[0].mxu0 %v766
        %v1011 = vpop.f32.mrb[0].mxu0
        %v1012 = vadd.f32 %v503, %v1011
        %v1013 = vpop.f32.mrb[0].mxu0
        %v1014 = vpop.f32.mrb[0].mxu0
        %v1015 = vadd.f32 %v503, %v1014
        %v1016 = vpop.f32.mrb[0].mxu0
        %1017 = vmatprep.mubr.bf16.mxu0 0
        %1018 = vmatmul.mubr.bf16.gmra.mrb[0].mxu0 %v767
        %v1019 = vpop.f32.mrb[0].mxu0
        %v1020 = vadd.f32 %v503, %v1019
        %v1021 = vpop.f32.mrb[0].mxu0
        %v1022 = vpop.f32.mrb[0].mxu0
        %v1023 = vadd.f32 %v503, %v1022
        %v1024 = vpop.f32.mrb[0].mxu0
        %1025 = vmatprep.mubr.bf16.mxu0 0
        %1026 = vmatmul.mubr.bf16.gmra.mrb[0].mxu0 %v768
        %v1027 = vpop.f32.mrb[0].mxu0
        %v1028 = vadd.f32 %v503, %v1027
        %v1029 = vpop.f32.mrb[0].mxu0
        %v1030 = vpop.f32.mrb[0].mxu0
        %v1031 = vadd.f32 %v503, %v1030
        %v1032 = vpop.f32.mrb[0].mxu0
        %1033 = vmatprep.mubr.bf16.mxu0 0
        %1034 = vmatmul.mubr.bf16.gmra.mrb[0].mxu0 %v769
        %v1035 = vpop.f32.mrb[0].mxu0
        %v1036 = vadd.f32 %v503, %v1035
        %v1037 = vpop.f32.mrb[0].mxu0
        %v1038 = vpop.f32.mrb[0].mxu0
        %v1039 = vadd.f32 %v503, %v1038
        %v1040 = vpop.f32.mrb[0].mxu0
        %1041 = vmatprep.mubr.bf16.mxu0 0
        %1042 = vmatmul.mubr.bf16.gmra.mrb[0].mxu0 %v770
        %v1043 = vpop.f32.mrb[0].mxu0
        %v1044 = vadd.f32 %v503, %v1043
        %v1045 = vpop.f32.mrb[0].mxu0
        %v1046 = vpop.f32.mrb[0].mxu0
        %v1047 = vadd.f32 %v503, %v1046
        %v1048 = vpop.f32.mrb[0].mxu0
        %1049 = vmatprep.mubr.bf16.mxu0 0
        %1050 = vmatmul.mubr.bf16.gmra.mrb[0].mxu0 %v771
        %v1051 = vpop.f32.mrb[0].mxu0
        %v1052 = vadd.f32 %v503, %v1051
        %v1053 = vpop.f32.mrb[0].mxu0
        %v1054 = vpop.f32.mrb[0].mxu0
        %v1055 = vadd.f32 %v503, %v1054
        %v1056 = vpop.f32.mrb[0].mxu0
        %1057 = vmatprep.mubr.bf16.mxu0 0
        %1058 = vmatmul.mubr.bf16.gmra.mrb[0].mxu0 %v772
        %v1059 = vpop.f32.mrb[0].mxu0
        %v1060 = vadd.f32 %v503, %v1059
        %v1061 = vpop.f32.mrb[0].mxu0
        %v1062 = vpop.f32.mrb[0].mxu0
        %v1063 = vadd.f32 %v503, %v1062
        %v1064 = vpop.f32.mrb[0].mxu0
        %1065 = vmatprep.mubr.bf16.mxu0 0
        %1066 = vmatmul.mubr.bf16.gmra.mrb[0].mxu0 %v773
        %v1067 = vpop.f32.mrb[0].mxu0
        %v1068 = vadd.f32 %v503, %v1067
        %v1069 = vpop.f32.mrb[0].mxu0
        %v1070 = vpop.f32.mrb[0].mxu0
        %v1071 = vadd.f32 %v503, %v1070
        %v1072 = vpop.f32.mrb[0].mxu0
        %1073 = vmatprep.mubr.bf16.mxu0 0
        %1074 = vmatmul.mubr.bf16.gmra.mrb[0].mxu0 %v774
        %v1075 = vpop.f32.mrb[0].mxu0
        %v1076 = vadd.f32 %v503, %v1075
        %v1077 = vpop.f32.mrb[0].mxu0
        %v1078 = vpop.f32.mrb[0].mxu0
        %v1079 = vadd.f32 %v503, %v1078
        %v1080 = vpop.f32.mrb[0].mxu0
        %1081 = vmatprep.mubr.bf16.mxu0 0
        %1082 = vmatmul.mubr.bf16.gmra.mrb[0].mxu0 %v775
        %v1083 = vpop.f32.mrb[0].mxu0
        %v1084 = vadd.f32 %v503, %v1083
        %v1085 = vpop.f32.mrb[0].mxu0
        %v1086 = vpop.f32.mrb[0].mxu0
        %v1087 = vadd.f32 %v503, %v1086
        %v1088 = vpop.f32.mrb[0].mxu0
        %1089 = vmatprep.mubr.bf16.mxu0 0
        %1090 = vmatmul.mubr.bf16.gmra.mrb[0].mxu0 %v776
        %v1091 = vpop.f32.mrb[0].mxu0
        %v1092 = vadd.f32 %v503, %v1091
        %v1093 = vpop.f32.mrb[0].mxu0
        %v1094 = vpop.f32.mrb[0].mxu0
        %v1095 = vadd.f32 %v503, %v1094
        %v1096 = vpop.f32.mrb[0].mxu0
        %1097 = vmatprep.mubr.bf16.mxu0 0
        %1098 = vmatmul.mubr.bf16.gmra.mrb[0].mxu0 %v777
        %v1099 = vpop.f32.mrb[0].mxu0
        %v1100 = vadd.f32 %v503, %v1099
        %v1101 = vpop.f32.mrb[0].mxu0
        %v1102 = vpop.f32.mrb[0].mxu0
        %v1103 = vadd.f32 %v503, %v1102
        %v1104 = vpop.f32.mrb[0].mxu0
        %1105 = vmatprep.mubr.bf16.mxu0 0
        %1106 = vmatmul.mubr.bf16.gmra.mrb[0].mxu0 %v778
        %v1107 = vpop.f32.mrb[0].mxu0
        %v1108 = vadd.f32 %v503, %v1107
        %v1109 = vpop.f32.mrb[0].mxu0
        %v1110 = vpop.f32.mrb[0].mxu0
        %v1111 = vadd.f32 %v503, %v1110
        %v1112 = vpop.f32.mrb[0].mxu0
        %1113 = vmatprep.mubr.bf16.mxu0 0
        %1114 = vmatmul.mubr.bf16.gmra.mrb[0].mxu0 %v779
        %v1115 = vpop.f32.mrb[0].mxu0
        %v1116 = vadd.f32 %v503, %v1115
        %v1117 = vpop.f32.mrb[0].mxu0
        %v1118 = vpop.f32.mrb[0].mxu0
        %v1119 = vadd.f32 %v503, %v1118
        %v1120 = vpop.f32.mrb[0].mxu0
        %1121 = vmatprep.mubr.bf16.mxu0 0
        %1122 = vmatmul.mubr.bf16.gmra.mrb[0].mxu0 %v780
        %v1123 = vpop.f32.mrb[0].mxu0
        %v1124 = vadd.f32 %v503, %v1123
        %v1125 = vpop.f32.mrb[0].mxu0
        %v1126 = vpop.f32.mrb[0].mxu0
        %v1127 = vadd.f32 %v503, %v1126
        %v1128 = vpop.f32.mrb[0].mxu0
        %1129 = vmatprep.mubr.bf16.mxu0 0
        %1130 = vmatmul.mubr.bf16.gmra.mrb[0].mxu0 %v781
        %v1131 = vpop.f32.mrb[0].mxu0
        %v1132 = vadd.f32 %v503, %v1131
        %v1133 = vpop.f32.mrb[0].mxu0
        %v1134 = vpop.f32.mrb[0].mxu0
        %v1135 = vadd.f32 %v503, %v1134
        %v1136 = vpop.f32.mrb[0].mxu0
        %1137 = vmatprep.mubr.bf16.mxu0 0
        %1138 = vmatmul.mubr.bf16.gmra.mrb[0].mxu0 %v782
        %v1139 = vpop.f32.mrb[0].mxu0
        %v1140 = vadd.f32 %v503, %v1139
        %v1141 = vpop.f32.mrb[0].mxu0
        %v1142 = vpop.f32.mrb[0].mxu0
        %v1143 = vadd.f32 %v503, %v1142
        %v1144 = vpop.f32.mrb[0].mxu0
        %1145 = vmatprep.mubr.bf16.mxu0 0
        %1146 = vmatmul.mubr.bf16.gmra.mrb[0].mxu0 %v783
        %v1147 = vpop.f32.mrb[0].mxu0
        %v1148 = vadd.f32 %v503, %v1147
        %v1149 = vpop.f32.mrb[0].mxu0
        %v1150 = vpop.f32.mrb[0].mxu0
        %v1151 = vadd.f32 %v503, %v1150
        %v1152 = vpop.f32.mrb[0].mxu0
        %1153 = vmatprep.mubr.bf16.mxu0 0
        %1154 = vmatmul.mubr.bf16.gmra.mrb[0].mxu0 %v784
        %v1155 = vpop.f32.mrb[0].mxu0
        %v1156 = vadd.f32 %v503, %v1155
        %v1157 = vpop.f32.mrb[0].mxu0
        %v1158 = vpop.f32.mrb[0].mxu0
        %v1159 = vadd.f32 %v503, %v1158
        %v1160 = vpop.f32.mrb[0].mxu0
        %1161 = vmatprep.mubr.bf16.mxu0 0
        %1162 = vmatmul.mubr.bf16.gmra.mrb[0].mxu0 %v785
        %v1163 = vpop.f32.mrb[0].mxu0
        %v1164 = vadd.f32 %v503, %v1163
        %v1165 = vpop.f32.mrb[0].mxu0
        %v1166 = vpop.f32.mrb[0].mxu0
        %v1167 = vadd.f32 %v503, %v1166
        %v1168 = vpop.f32.mrb[0].mxu0
        %1169 = vmatprep.mubr.bf16.mxu0 0
        %1170 = vmatmul.mubr.bf16.gmra.mrb[0].mxu0 %v786
        %v1171 = vpop.f32.mrb[0].mxu0
        %v1172 = vadd.f32 %v503, %v1171
        %v1173 = vpop.f32.mrb[0].mxu0
        %v1174 = vpop.f32.mrb[0].mxu0
        %v1175 = vadd.f32 %v503, %v1174
        %v1176 = vpop.f32.mrb[0].mxu0
        %1177 = vmatprep.mubr.bf16.mxu0 0
        %1178 = vmatmul.mubr.bf16.gmra.mrb[0].mxu0 %v787
        %v1179 = vpop.f32.mrb[0].mxu0
        %v1180 = vadd.f32 %v503, %v1179
        %v1181 = vpop.f32.mrb[0].mxu0
        %v1182 = vpop.f32.mrb[0].mxu0
        %v1183 = vadd.f32 %v503, %v1182
        %v1184 = vpop.f32.mrb[0].mxu0
        %1185 = vmatprep.mubr.bf16.mxu0 0
        %1186 = vmatmul.mubr.bf16.gmra.mrb[0].mxu0 %v788
        %v1187 = vpop.f32.mrb[0].mxu0
        %v1188 = vadd.f32 %v503, %v1187
        %v1189 = vpop.f32.mrb[0].mxu0
        %v1190 = vpop.f32.mrb[0].mxu0
        %v1191 = vadd.f32 %v503, %v1190
        %v1192 = vpop.f32.mrb[0].mxu0
        %1193 = vmatprep.mubr.bf16.mxu0 0
        %1194 = vmatmul.mubr.bf16.gmra.mrb[0].mxu0 %v789
        %v1195 = vpop.f32.mrb[0].mxu0
        %v1196 = vadd.f32 %v503, %v1195
        %v1197 = vpop.f32.mrb[0].mxu0
        %v1198 = vpop.f32.mrb[0].mxu0
        %v1199 = vadd.f32 %v503, %v1198
        %v1200 = vpop.f32.mrb[0].mxu0
        %1201 = vmatprep.mubr.bf16.mxu0 0
        %1202 = vmatmul.mubr.bf16.gmra.mrb[0].mxu0 %v790
        %v1203 = vpop.f32.mrb[0].mxu0
        %v1204 = vadd.f32 %v503, %v1203
        %v1205 = vpop.f32.mrb[0].mxu0
        %v1206 = vpop.f32.mrb[0].mxu0
        %v1207 = vadd.f32 %v503, %v1206
        %v1208 = vpop.f32.mrb[0].mxu0
        %1209 = vmatprep.mubr.bf16.mxu0 0
        %1210 = vmatmul.mubr.bf16.gmra.mrb[0].mxu0 %v791
        %v1211 = vpop.f32.mrb[0].mxu0
        %v1212 = vadd.f32 %v503, %v1211
        %v1213 = vpop.f32.mrb[0].mxu0
        %v1214 = vpop.f32.mrb[0].mxu0
        %v1215 = vadd.f32 %v503, %v1214
        %v1216 = vpop.f32.mrb[0].mxu0
        %1217 = vmatprep.mubr.bf16.mxu0 0
        %1218 = vmatmul.mubr.bf16.gmra.mrb[0].mxu0 %v792
        %v1219 = vpop.f32.mrb[0].mxu0
        %v1220 = vadd.f32 %v503, %v1219
        %v1221 = vpop.f32.mrb[0].mxu0
        %v1222 = vpop.f32.mrb[0].mxu0
        %v1223 = vadd.f32 %v503, %v1222
        %v1224 = vpop.f32.mrb[0].mxu0
        %1225 = vmatprep.mubr.bf16.mxu0 0
        %1226 = vmatmul.mubr.bf16.gmra.mrb[0].mxu0 %v793
        %v1227 = vpop.f32.mrb[0].mxu0
        %v1228 = vadd.f32 %v503, %v1227
        %v1229 = vpop.f32.mrb[0].mxu0
        %v1230 = vpop.f32.mrb[0].mxu0
        %v1231 = vadd.f32 %v503, %v1230
        %v1232 = vpop.f32.mrb[0].mxu0
        %1233 = vmatprep.mubr.bf16.mxu0 0
        %1234 = vmatmul.mubr.bf16.gmra.mrb[0].mxu0 %v794
        %v1235 = vpop.f32.mrb[0].mxu0
        %v1236 = vadd.f32 %v503, %v1235
        %v1237 = vpop.f32.mrb[0].mxu0
        %v1238 = vpop.f32.mrb[0].mxu0
        %v1239 = vadd.f32 %v503, %v1238
        %v1240 = vpop.f32.mrb[0].mxu0
        %1241 = vmatprep.mubr.bf16.mxu0 0
        %1242 = vmatmul.mubr.bf16.gmra.mrb[0].mxu0 %v795
        %v1243 = vpop.f32.mrb[0].mxu0
        %v1244 = vadd.f32 %v503, %v1243
        %v1245 = vpop.f32.mrb[0].mxu0
        %v1246 = vpop.f32.mrb[0].mxu0
        %v1247 = vadd.f32 %v503, %v1246
        %v1248 = vpop.f32.mrb[0].mxu0
        %1249 = vmatprep.mubr.bf16.mxu0 0
        %1250 = vmatmul.mubr.bf16.gmra.mrb[0].mxu0 %v796
        %v1251 = vpop.f32.mrb[0].mxu0
        %v1252 = vadd.f32 %v503, %v1251
        %v1253 = vpop.f32.mrb[0].mxu0
        %v1254 = vpop.f32.mrb[0].mxu0
        %v1255 = vadd.f32 %v503, %v1254
        %v1256 = vpop.f32.mrb[0].mxu0
        %1257 = vmatprep.mubr.bf16.mxu0 0
        %1258 = vmatmul.mubr.bf16.gmra.mrb[0].mxu0 %v797
        %v1259 = vpop.f32.mrb[0].mxu0
        %v1260 = vadd.f32 %v503, %v1259
        %v1261 = vpop.f32.mrb[0].mxu0
        %v1262 = vpop.f32.mrb[0].mxu0
        %v1263 = vadd.f32 %v503, %v1262
        %v1264 = vpop.f32.mrb[0].mxu0
        %1265 = vmatprep.mubr.bf16.mxu0 0
        %1266 = vmatmul.mubr.bf16.gmra.mrb[0].mxu0 %v798
        %v1267 = vpop.f32.mrb[0].mxu0
        %v1268 = vadd.f32 %v503, %v1267
        %v1269 = vpop.f32.mrb[0].mxu0
        %v1270 = vpop.f32.mrb[0].mxu0
        %v1271 = vadd.f32 %v503, %v1270
        %v1272 = vpop.f32.mrb[0].mxu0
        %1273 = vmatprep.mubr.bf16.mxu0 0
        %1274 = vmatmul.mubr.bf16.gmra.mrb[0].mxu0 %v799
        %v1275 = vpop.f32.mrb[0].mxu0
        %v1276 = vadd.f32 %v503, %v1275
        %v1277 = vpop.f32.mrb[0].mxu0
        %v1278 = vpop.f32.mrb[0].mxu0
        %v1279 = vadd.f32 %v503, %v1278
        %v1280 = vpop.f32.mrb[0].mxu0
        %1281 = vmatprep.mubr.bf16.mxu0 0
        %1282 = vmatmul.mubr.bf16.gmra.mrb[0].mxu0 %v800
        %v1283 = vpop.f32.mrb[0].mxu0
        %v1284 = vadd.f32 %v503, %v1283
        %v1285 = vpop.f32.mrb[0].mxu0
        %v1286 = vpop.f32.mrb[0].mxu0
        %v1287 = vadd.f32 %v503, %v1286
        %v1288 = vpop.f32.mrb[0].mxu0
        %1289 = vmatprep.mubr.bf16.mxu0 0
        %1290 = vmatmul.mubr.bf16.gmra.mrb[0].mxu0 %v801
        %v1291 = vpop.f32.mrb[0].mxu0
        %v1292 = vadd.f32 %v503, %v1291
        %v1293 = vpop.f32.mrb[0].mxu0
        %v1294 = vpop.f32.mrb[0].mxu0
        %v1295 = vadd.f32 %v503, %v1294
        %v1296 = vpop.f32.mrb[0].mxu0
        %1297 = vmatprep.mubr.bf16.mxu0 0
        %1298 = vmatmul.mubr.bf16.gmra.mrb[0].mxu0 %v802
        %v1299 = vpop.f32.mrb[0].mxu0
        %v1300 = vadd.f32 %v503, %v1299
        %v1301 = vpop.f32.mrb[0].mxu0
        %v1302 = vpop.f32.mrb[0].mxu0
        %v1303 = vadd.f32 %v503, %v1302
        %v1304 = vpop.f32.mrb[0].mxu0
        %1305 = vmatprep.mubr.bf16.mxu0 0
        %1306 = vmatmul.mubr.bf16.gmra.mrb[0].mxu0 %v803
        %v1307 = vpop.f32.mrb[0].mxu0
        %v1308 = vadd.f32 %v503, %v1307
        %v1309 = vpop.f32.mrb[0].mxu0
        %v1310 = vpop.f32.mrb[0].mxu0
        %v1311 = vadd.f32 %v503, %v1310
        %v1312 = vpop.f32.mrb[0].mxu0
        %1313 = vmatprep.mubr.bf16.mxu0 0
        %1314 = vmatmul.mubr.bf16.gmra.mrb[0].mxu0 %v804
        %v1315 = vpop.f32.mrb[0].mxu0
        %v1316 = vadd.f32 %v503, %v1315
        %v1317 = vpop.f32.mrb[0].mxu0
        %v1318 = vpop.f32.mrb[0].mxu0
        %v1319 = vadd.f32 %v503, %v1318
        %v1320 = vpop.f32.mrb[0].mxu0
        %1321 = vmatprep.mubr.bf16.mxu0 0
        %1322 = vmatmul.mubr.bf16.gmra.mrb[0].mxu0 %v805
        %v1323 = vpop.f32.mrb[0].mxu0
        %v1324 = vadd.f32 %v503, %v1323
        %v1325 = vpop.f32.mrb[0].mxu0
        %v1326 = vpop.f32.mrb[0].mxu0
        %v1327 = vadd.f32 %v503, %v1326
        %v1328 = vpop.f32.mrb[0].mxu0
        %1329 = vmatprep.mubr.bf16.mxu0 0
        %1330 = vmatmul.mubr.bf16.gmra.mrb[0].mxu0 %v806
        %v1331 = vpop.f32.mrb[0].mxu0
        %v1332 = vadd.f32 %v503, %v1331
        %v1333 = vpop.f32.mrb[0].mxu0
        %v1334 = vpop.f32.mrb[0].mxu0
        %v1335 = vadd.f32 %v503, %v1334
        %v1336 = vpop.f32.mrb[0].mxu0
        %1337 = vmatprep.mubr.bf16.mxu0 0
        %1338 = vmatmul.mubr.bf16.gmra.mrb[0].mxu0 %v807
        %v1339 = vpop.f32.mrb[0].mxu0
        %v1340 = vadd.f32 %v503, %v1339
        %v1341 = vpop.f32.mrb[0].mxu0
        %v1342 = vpop.f32.mrb[0].mxu0
        %v1343 = vadd.f32 %v503, %v1342
        %v1344 = vpop.f32.mrb[0].mxu0
        %1345 = vmatprep.mubr.bf16.mxu0 0
        %1346 = vmatmul.mubr.bf16.gmra.mrb[0].mxu0 %v808
        %v1347 = vpop.f32.mrb[0].mxu0
        %v1348 = vadd.f32 %v503, %v1347
        %v1349 = vpop.f32.mrb[0].mxu0
        %v1350 = vpop.f32.mrb[0].mxu0
        %v1351 = vadd.f32 %v503, %v1350
        %v1352 = vpop.f32.mrb[0].mxu0
        %1353 = vmatprep.mubr.bf16.mxu0 0
        %1354 = vmatmul.mubr.bf16.gmra.mrb[0].mxu0 %v809
        %v1355 = vpop.f32.mrb[0].mxu0
        %v1356 = vadd.f32 %v503, %v1355
        %v1357 = vpop.f32.mrb[0].mxu0
        %v1358 = vpop.f32.mrb[0].mxu0
        %v1359 = vadd.f32 %v503, %v1358
        %v1360 = vpop.f32.mrb[0].mxu0
        %1361 = vmatprep.mubr.bf16.mxu0 0
        %1362 = vmatmul.mubr.bf16.gmra.mrb[0].mxu0 %v810
        %v1363 = vpop.f32.mrb[0].mxu0
        %v1364 = vadd.f32 %v503, %v1363
        %v1365 = vpop.f32.mrb[0].mxu0
        %v1366 = vpop.f32.mrb[0].mxu0
        %v1367 = vadd.f32 %v503, %v1366
        %v1368 = vpop.f32.mrb[0].mxu0
        %1369 = vmatprep.mubr.bf16.mxu0 0
        %1370 = vmatmul.mubr.bf16.gmra.mrb[0].mxu0 %v811
        %v1371 = vpop.f32.mrb[0].mxu0
        %v1372 = vadd.f32 %v503, %v1371
        %v1373 = vpop.f32.mrb[0].mxu0
        %v1374 = vpop.f32.mrb[0].mxu0
        %v1375 = vadd.f32 %v503, %v1374
        %v1376 = vpop.f32.mrb[0].mxu0
        %1377 = vmatprep.mubr.bf16.mxu0 0
        %1378 = vmatmul.mubr.bf16.gmra.mrb[0].mxu0 %v812
        %v1379 = vpop.f32.mrb[0].mxu0
        %v1380 = vadd.f32 %v503, %v1379
        %v1381 = vpop.f32.mrb[0].mxu0
        %v1382 = vpop.f32.mrb[0].mxu0
        %v1383 = vadd.f32 %v503, %v1382
        %v1384 = vpop.f32.mrb[0].mxu0
        %1385 = vmatprep.mubr.bf16.mxu0 0
        %1386 = vmatmul.mubr.bf16.gmra.mrb[0].mxu0 %v813
        %v1387 = vpop.f32.mrb[0].mxu0
        %v1388 = vadd.f32 %v503, %v1387
        %v1389 = vpop.f32.mrb[0].mxu0
        %v1390 = vpop.f32.mrb[0].mxu0
        %v1391 = vadd.f32 %v503, %v1390
        %v1392 = vpop.f32.mrb[0].mxu0
        %1393 = vmatprep.mubr.bf16.mxu0 0
        %1394 = vmatmul.mubr.bf16.gmra.mrb[0].mxu0 %v814
        %v1395 = vpop.f32.mrb[0].mxu0
        %v1396 = vadd.f32 %v503, %v1395
        %v1397 = vpop.f32.mrb[0].mxu0
        %v1398 = vpop.f32.mrb[0].mxu0
        %v1399 = vadd.f32 %v503, %v1398
        %v1400 = vpop.f32.mrb[0].mxu0
        %1401 = vmatprep.mubr.bf16.mxu0 0
        %1402 = vmatmul.mubr.bf16.gmra.mrb[0].mxu0 %v815
        %v1403 = vpop.f32.mrb[0].mxu0
        %v1404 = vadd.f32 %v503, %v1403
        %v1405 = vpop.f32.mrb[0].mxu0
        %v1406 = vpop.f32.mrb[0].mxu0
        %v1407 = vadd.f32 %v503, %v1406
        %v1408 = vpop.f32.mrb[0].mxu0
        %1409 = vmatprep.mubr.bf16.mxu0 0
        %1410 = vmatmul.mubr.bf16.gmra.mrb[0].mxu0 %v816
        %v1411 = vpop.f32.mrb[0].mxu0
        %v1412 = vadd.f32 %v503, %v1411
        %v1413 = vpop.f32.mrb[0].mxu0
        %v1414 = vpop.f32.mrb[0].mxu0
        %v1415 = vadd.f32 %v503, %v1414
        %v1416 = vpop.f32.mrb[0].mxu0
        %1417 = vmatprep.mubr.bf16.mxu0 0
        %1418 = vmatmul.mubr.bf16.gmra.mrb[0].mxu0 %v817
        %v1419 = vpop.f32.mrb[0].mxu0
        %v1420 = vadd.f32 %v503, %v1419
        %v1421 = vpop.f32.mrb[0].mxu0
        %v1422 = vpop.f32.mrb[0].mxu0
        %v1423 = vadd.f32 %v503, %v1422
        %v1424 = vpop.f32.mrb[0].mxu0
        %1425 = vmatprep.mubr.bf16.mxu0 0
        %1426 = vmatmul.mubr.bf16.gmra.mrb[0].mxu0 %v818
        %v1427 = vpop.f32.mrb[0].mxu0
        %v1428 = vadd.f32 %v503, %v1427
        %v1429 = vpop.f32.mrb[0].mxu0
        %v1430 = vpop.f32.mrb[0].mxu0
        %v1431 = vadd.f32 %v503, %v1430
        %v1432 = vpop.f32.mrb[0].mxu0
        %1433 = vmatprep.mubr.bf16.mxu0 0
        %1434 = vmatmul.mubr.bf16.gmra.mrb[0].mxu0 %v819
        %v1435 = vpop.f32.mrb[0].mxu0
        %v1436 = vadd.f32 %v503, %v1435
        %v1437 = vpop.f32.mrb[0].mxu0
        %v1438 = vpop.f32.mrb[0].mxu0
        %v1439 = vadd.f32 %v503, %v1438
        %v1440 = vpop.f32.mrb[0].mxu0
        %1441 = vmatprep.mubr.bf16.mxu0 0
        %1442 = vmatmul.mubr.bf16.gmra.mrb[0].mxu0 %v820
        %v1443 = vpop.f32.mrb[0].mxu0
        %v1444 = vadd.f32 %v503, %v1443
        %v1445 = vpop.f32.mrb[0].mxu0
        %v1446 = vpop.f32.mrb[0].mxu0
        %v1447 = vadd.f32 %v503, %v1446
        %v1448 = vpop.f32.mrb[0].mxu0
        %1449 = vmatprep.mubr.bf16.mxu0 0
        %1450 = vmatmul.mubr.bf16.gmra.mrb[0].mxu0 %v821
        %v1451 = vpop.f32.mrb[0].mxu0
        %v1452 = vadd.f32 %v503, %v1451
        %v1453 = vpop.f32.mrb[0].mxu0
        %v1454 = vpop.f32.mrb[0].mxu0
        %v1455 = vadd.f32 %v503, %v1454
        %v1456 = vpop.f32.mrb[0].mxu0
        %1457 = vmatprep.mubr.bf16.mxu0 0
        %1458 = vmatmul.mubr.bf16.gmra.mrb[0].mxu0 %v822
        %v1459 = vpop.f32.mrb[0].mxu0
        %v1460 = vadd.f32 %v503, %v1459
        %v1461 = vpop.f32.mrb[0].mxu0
        %v1462 = vpop.f32.mrb[0].mxu0
        %v1463 = vadd.f32 %v503, %v1462
        %v1464 = vpop.f32.mrb[0].mxu0
        %1465 = vmatprep.mubr.bf16.mxu0 0
        %1466 = vmatmul.mubr.bf16.gmra.mrb[0].mxu0 %v823
        %v1467 = vpop.f32.mrb[0].mxu0
        %v1468 = vadd.f32 %v503, %v1467
        %v1469 = vpop.f32.mrb[0].mxu0
        %v1470 = vpop.f32.mrb[0].mxu0
        %v1471 = vadd.f32 %v503, %v1470
        %v1472 = vpop.f32.mrb[0].mxu0
        %1473 = vmatprep.mubr.bf16.mxu0 0
        %1474 = vmatmul.mubr.bf16.gmra.mrb[0].mxu0 %v824
        %v1475 = vpop.f32.mrb[0].mxu0
        %v1476 = vadd.f32 %v503, %v1475
        %v1477 = vpop.f32.mrb[0].mxu0
        %v1478 = vpop.f32.mrb[0].mxu0
        %v1479 = vadd.f32 %v503, %v1478
        %v1480 = vpop.f32.mrb[0].mxu0
        %1481 = vdwg.mxu0
        %v1482 = vmax.f32 %v972, 0.0
        %v1483 = vmax.f32 %v975, 0.0
        %v1484 = vmax.f32 %v980, 0.0
        %v1485 = vmax.f32 %v983, 0.0
        %v1486 = vmax.f32 %v988, 0.0
        %v1487 = vmax.f32 %v991, 0.0
        %v1488 = vmax.f32 %v996, 0.0
        %v1489 = vmax.f32 %v999, 0.0
        %v1490 = vmax.f32 %v1004, 0.0
        %v1491 = vmax.f32 %v1007, 0.0
        %v1492 = vmax.f32 %v1012, 0.0
        %v1493 = vmax.f32 %v1015, 0.0
        %v1494 = vmax.f32 %v1020, 0.0
        %v1495 = vmax.f32 %v1023, 0.0
        %v1496 = vmax.f32 %v1028, 0.0
        %v1497 = vmax.f32 %v1031, 0.0
        %v1498 = vmax.f32 %v1036, 0.0
        %v1499 = vmax.f32 %v1039, 0.0
        %v1500 = vmax.f32 %v1044, 0.0
        %v1501 = vmax.f32 %v1047, 0.0
        %v1502 = vmax.f32 %v1052, 0.0
        %v1503 = vmax.f32 %v1055, 0.0
        %v1504 = vmax.f32 %v1060, 0.0
        %v1505 = vmax.f32 %v1063, 0.0
        %v1506 = vmax.f32 %v1068, 0.0
        %v1507 = vmax.f32 %v1071, 0.0
        %v1508 = vmax.f32 %v1076, 0.0
        %v1509 = vmax.f32 %v1079, 0.0
        %v1510 = vmax.f32 %v1084, 0.0
        %v1511 = vmax.f32 %v1087, 0.0
        %v1512 = vmax.f32 %v1092, 0.0
        %v1513 = vmax.f32 %v1095, 0.0
        %v1514 = vmax.f32 %v1100, 0.0
        %v1515 = vmax.f32 %v1103, 0.0
        %v1516 = vmax.f32 %v1108, 0.0
        %v1517 = vmax.f32 %v1111, 0.0
        %v1518 = vmax.f32 %v1116, 0.0
        %v1519 = vmax.f32 %v1119, 0.0
        %v1520 = vmax.f32 %v1124, 0.0
        %v1521 = vmax.f32 %v1127, 0.0
        %v1522 = vmax.f32 %v1132, 0.0
        %v1523 = vmax.f32 %v1135, 0.0
        %v1524 = vmax.f32 %v1140, 0.0
        %v1525 = vmax.f32 %v1143, 0.0
        %v1526 = vmax.f32 %v1148, 0.0
        %v1527 = vmax.f32 %v1151, 0.0
        %v1528 = vmax.f32 %v1156, 0.0
        %v1529 = vmax.f32 %v1159, 0.0
        %v1530 = vmax.f32 %v1164, 0.0
        %v1531 = vmax.f32 %v1167, 0.0
        %v1532 = vmax.f32 %v1172, 0.0
        %v1533 = vmax.f32 %v1175, 0.0
        %v1534 = vmax.f32 %v1180, 0.0
        %v1535 = vmax.f32 %v1183, 0.0
        %v1536 = vmax.f32 %v1188, 0.0
        %v1537 = vmax.f32 %v1191, 0.0
        %v1538 = vmax.f32 %v1196, 0.0
        %v1539 = vmax.f32 %v1199, 0.0
        %v1540 = vmax.f32 %v1204, 0.0
        %v1541 = vmax.f32 %v1207, 0.0
        %v1542 = vmax.f32 %v1212, 0.0
        %v1543 = vmax.f32 %v1215, 0.0
        %v1544 = vmax.f32 %v1220, 0.0
        %v1545 = vmax.f32 %v1223, 0.0
        %v1546 = vmax.f32 %v1228, 0.0
        %v1547 = vmax.f32 %v1231, 0.0
        %v1548 = vmax.f32 %v1236, 0.0
        %v1549 = vmax.f32 %v1239, 0.0
        %v1550 = vmax.f32 %v1244, 0.0
        %v1551 = vmax.f32 %v1247, 0.0
        %v1552 = vmax.f32 %v1252, 0.0
        %v1553 = vmax.f32 %v1255, 0.0
        %v1554 = vmax.f32 %v1260, 0.0
        %v1555 = vmax.f32 %v1263, 0.0
        %v1556 = vmax.f32 %v1268, 0.0
        %v1557 = vmax.f32 %v1271, 0.0
        %v1558 = vmax.f32 %v1276, 0.0
        %v1559 = vmax.f32 %v1279, 0.0
        %v1560 = vmax.f32 %v1284, 0.0
        %v1561 = vmax.f32 %v1287, 0.0
        %v1562 = vmax.f32 %v1292, 0.0
        %v1563 = vmax.f32 %v1295, 0.0
        %v1564 = vmax.f32 %v1300, 0.0
        %v1565 = vmax.f32 %v1303, 0.0
        %v1566 = vmax.f32 %v1308, 0.0
        %v1567 = vmax.f32 %v1311, 0.0
        %v1568 = vmax.f32 %v1316, 0.0
        %v1569 = vmax.f32 %v1319, 0.0
        %v1570 = vmax.f32 %v1324, 0.0
        %v1571 = vmax.f32 %v1327, 0.0
        %v1572 = vmax.f32 %v1332, 0.0
        %v1573 = vmax.f32 %v1335, 0.0
        %v1574 = vmax.f32 %v1340, 0.0
        %v1575 = vmax.f32 %v1343, 0.0
        %v1576 = vmax.f32 %v1348, 0.0
        %v1577 = vmax.f32 %v1351, 0.0
        %v1578 = vmax.f32 %v1356, 0.0
        %v1579 = vmax.f32 %v1359, 0.0
        %v1580 = vmax.f32 %v1364, 0.0
        %v1581 = vmax.f32 %v1367, 0.0
        %v1582 = vmax.f32 %v1372, 0.0
        %v1583 = vmax.f32 %v1375, 0.0
        %v1584 = vmax.f32 %v1380, 0.0
        %v1585 = vmax.f32 %v1383, 0.0
        %v1586 = vmax.f32 %v1388, 0.0
        %v1587 = vmax.f32 %v1391, 0.0
        %v1588 = vmax.f32 %v1396, 0.0
        %v1589 = vmax.f32 %v1399, 0.0
        %v1590 = vmax.f32 %v1404, 0.0
        %v1591 = vmax.f32 %v1407, 0.0
        %v1592 = vmax.f32 %v1412, 0.0
        %v1593 = vmax.f32 %v1415, 0.0
        %v1594 = vmax.f32 %v1420, 0.0
        %v1595 = vmax.f32 %v1423, 0.0
        %v1596 = vmax.f32 %v1428, 0.0
        %v1597 = vmax.f32 %v1431, 0.0
        %v1598 = vmax.f32 %v1436, 0.0
        %v1599 = vmax.f32 %v1439, 0.0
        %v1600 = vmax.f32 %v1444, 0.0
        %v1601 = vmax.f32 %v1447, 0.0
        %v1602 = vmax.f32 %v1452, 0.0
        %v1603 = vmax.f32 %v1455, 0.0
        %v1604 = vmax.f32 %v1460, 0.0
        %v1605 = vmax.f32 %v1463, 0.0
        %v1606 = vmax.f32 %v1468, 0.0
        %v1607 = vmax.f32 %v1471, 0.0
        %v1608 = vmax.f32 %v1476, 0.0
        %v1609 = vmax.f32 %v1479, 0.0
        %v1610 = vpack.c.bf16 %v1483, %v1482
        %v1611 = vpack.c.bf16 %v1485, %v1484
        %v1612 = vpack.c.bf16 %v1487, %v1486
        %v1613 = vpack.c.bf16 %v1489, %v1488
        %v1614 = vpack.c.bf16 %v1491, %v1490
        %v1615 = vpack.c.bf16 %v1493, %v1492
        %v1616 = vpack.c.bf16 %v1495, %v1494
        %v1617 = vpack.c.bf16 %v1497, %v1496
        %v1618 = vpack.c.bf16 %v1499, %v1498
        %v1619 = vpack.c.bf16 %v1501, %v1500
        %v1620 = vpack.c.bf16 %v1503, %v1502
        %v1621 = vpack.c.bf16 %v1505, %v1504
        %v1622 = vpack.c.bf16 %v1507, %v1506
        %v1623 = vpack.c.bf16 %v1509, %v1508
        %v1624 = vpack.c.bf16 %v1511, %v1510
        %v1625 = vpack.c.bf16 %v1513, %v1512
        %v1626 = vpack.c.bf16 %v1515, %v1514
        %v1627 = vpack.c.bf16 %v1517, %v1516
        %v1628 = vpack.c.bf16 %v1519, %v1518
        %v1629 = vpack.c.bf16 %v1521, %v1520
        %v1630 = vpack.c.bf16 %v1523, %v1522
        %v1631 = vpack.c.bf16 %v1525, %v1524
        %v1632 = vpack.c.bf16 %v1527, %v1526
        %v1633 = vpack.c.bf16 %v1529, %v1528
        %v1634 = vpack.c.bf16 %v1531, %v1530
        %v1635 = vpack.c.bf16 %v1533, %v1532
        %v1636 = vpack.c.bf16 %v1535, %v1534
        %v1637 = vpack.c.bf16 %v1537, %v1536
        %v1638 = vpack.c.bf16 %v1539, %v1538
        %v1639 = vpack.c.bf16 %v1541, %v1540
        %v1640 = vpack.c.bf16 %v1543, %v1542
        %v1641 = vpack.c.bf16 %v1545, %v1544
        %v1642 = vpack.c.bf16 %v1547, %v1546
        %v1643 = vpack.c.bf16 %v1549, %v1548
        %v1644 = vpack.c.bf16 %v1551, %v1550
        %v1645 = vpack.c.bf16 %v1553, %v1552
        %v1646 = vpack.c.bf16 %v1555, %v1554
        %v1647 = vpack.c.bf16 %v1557, %v1556
        %v1648 = vpack.c.bf16 %v1559, %v1558
        %v1649 = vpack.c.bf16 %v1561, %v1560
        %v1650 = vpack.c.bf16 %v1563, %v1562
        %v1651 = vpack.c.bf16 %v1565, %v1564
        %v1652 = vpack.c.bf16 %v1567, %v1566
        %v1653 = vpack.c.bf16 %v1569, %v1568
        %v1654 = vpack.c.bf16 %v1571, %v1570
        %v1655 = vpack.c.bf16 %v1573, %v1572
        %v1656 = vpack.c.bf16 %v1575, %v1574
        %v1657 = vpack.c.bf16 %v1577, %v1576
        %v1658 = vpack.c.bf16 %v1579, %v1578
        %v1659 = vpack.c.bf16 %v1581, %v1580
        %v1660 = vpack.c.bf16 %v1583, %v1582
        %v1661 = vpack.c.bf16 %v1585, %v1584
        %v1662 = vpack.c.bf16 %v1587, %v1586
        %v1663 = vpack.c.bf16 %v1589, %v1588
        %v1664 = vpack.c.bf16 %v1591, %v1590
        %v1665 = vpack.c.bf16 %v1593, %v1592
        %v1666 = vpack.c.bf16 %v1595, %v1594
        %v1667 = vpack.c.bf16 %v1597, %v1596
        %v1668 = vpack.c.bf16 %v1599, %v1598
        %v1669 = vpack.c.bf16 %v1601, %v1600
        %v1670 = vpack.c.bf16 %v1603, %v1602
        %v1671 = vpack.c.bf16 %v1605, %v1604
        %v1672 = vpack.c.bf16 %v1607, %v1606
        %v1673 = vpack.c.bf16 %v1609, %v1608
        %v1738 = vunpack.c.l.b16 %v1610
        %v1739 = vunpack.c.h.b16 %v1610
        %v1740 = vunpack.c.l.b16 %v1611
        %v1741 = vunpack.c.h.b16 %v1611
        %v1742 = vunpack.c.l.b16 %v1612
        %v1743 = vunpack.c.h.b16 %v1612
        %v1744 = vunpack.c.l.b16 %v1613
        %v1745 = vunpack.c.h.b16 %v1613
        %v1746 = vunpack.c.l.b16 %v1614
        %v1747 = vunpack.c.h.b16 %v1614
        %v1748 = vunpack.c.l.b16 %v1615
        %v1749 = vunpack.c.h.b16 %v1615
        %v1750 = vunpack.c.l.b16 %v1616
        %v1751 = vunpack.c.h.b16 %v1616
        %v1752 = vunpack.c.l.b16 %v1617
        %v1753 = vunpack.c.h.b16 %v1617
        %v1754 = vunpack.c.l.b16 %v1618
        %v1755 = vunpack.c.h.b16 %v1618
        %v1756 = vunpack.c.l.b16 %v1619
        %v1757 = vunpack.c.h.b16 %v1619
        %v1758 = vunpack.c.l.b16 %v1620
        %v1759 = vunpack.c.h.b16 %v1620
        %v1760 = vunpack.c.l.b16 %v1621
        %v1761 = vunpack.c.h.b16 %v1621
        %v1762 = vunpack.c.l.b16 %v1622
        %v1763 = vunpack.c.h.b16 %v1622
        %v1764 = vunpack.c.l.b16 %v1623
        %v1765 = vunpack.c.h.b16 %v1623
        %v1766 = vunpack.c.l.b16 %v1624
        %v1767 = vunpack.c.h.b16 %v1624
        %v1768 = vunpack.c.l.b16 %v1625
        %v1769 = vunpack.c.h.b16 %v1625
        %v1770 = vunpack.c.l.b16 %v1626
        %v1771 = vunpack.c.h.b16 %v1626
        %v1772 = vunpack.c.l.b16 %v1627
        %v1773 = vunpack.c.h.b16 %v1627
        %v1774 = vunpack.c.l.b16 %v1628
        %v1775 = vunpack.c.h.b16 %v1628
        %v1776 = vunpack.c.l.b16 %v1629
        %v1777 = vunpack.c.h.b16 %v1629
        %v1778 = vunpack.c.l.b16 %v1630
        %v1779 = vunpack.c.h.b16 %v1630
        %v1780 = vunpack.c.l.b16 %v1631
        %v1781 = vunpack.c.h.b16 %v1631
        %v1782 = vunpack.c.l.b16 %v1632
        %v1783 = vunpack.c.h.b16 %v1632
        %v1784 = vunpack.c.l.b16 %v1633
        %v1785 = vunpack.c.h.b16 %v1633
        %v1786 = vunpack.c.l.b16 %v1634
        %v1787 = vunpack.c.h.b16 %v1634
        %v1788 = vunpack.c.l.b16 %v1635
        %v1789 = vunpack.c.h.b16 %v1635
        %v1790 = vunpack.c.l.b16 %v1636
        %v1791 = vunpack.c.h.b16 %v1636
        %v1792 = vunpack.c.l.b16 %v1637
        %v1793 = vunpack.c.h.b16 %v1637
        %v1794 = vunpack.c.l.b16 %v1638
        %v1795 = vunpack.c.h.b16 %v1638
        %v1796 = vunpack.c.l.b16 %v1639
        %v1797 = vunpack.c.h.b16 %v1639
        %v1798 = vunpack.c.l.b16 %v1640
        %v1799 = vunpack.c.h.b16 %v1640
        %v1800 = vunpack.c.l.b16 %v1641
        %v1801 = vunpack.c.h.b16 %v1641
        %v1802 = vunpack.c.l.b16 %v1642
        %v1803 = vunpack.c.h.b16 %v1642
        %v1804 = vunpack.c.l.b16 %v1643
        %v1805 = vunpack.c.h.b16 %v1643
        %v1806 = vunpack.c.l.b16 %v1644
        %v1807 = vunpack.c.h.b16 %v1644
        %v1808 = vunpack.c.l.b16 %v1645
        %v1809 = vunpack.c.h.b16 %v1645
        %v1810 = vunpack.c.l.b16 %v1646
        %v1811 = vunpack.c.h.b16 %v1646
        %v1812 = vunpack.c.l.b16 %v1647
        %v1813 = vunpack.c.h.b16 %v1647
        %v1814 = vunpack.c.l.b16 %v1648
        %v1815 = vunpack.c.h.b16 %v1648
        %v1816 = vunpack.c.l.b16 %v1649
        %v1817 = vunpack.c.h.b16 %v1649
        %v1818 = vunpack.c.l.b16 %v1650
        %v1819 = vunpack.c.h.b16 %v1650
        %v1820 = vunpack.c.l.b16 %v1651
        %v1821 = vunpack.c.h.b16 %v1651
        %v1822 = vunpack.c.l.b16 %v1652
        %v1823 = vunpack.c.h.b16 %v1652
        %v1824 = vunpack.c.l.b16 %v1653
        %v1825 = vunpack.c.h.b16 %v1653
        %v1826 = vunpack.c.l.b16 %v1654
        %v1827 = vunpack.c.h.b16 %v1654
        %v1828 = vunpack.c.l.b16 %v1655
        %v1829 = vunpack.c.h.b16 %v1655
        %v1830 = vunpack.c.l.b16 %v1656
        %v1831 = vunpack.c.h.b16 %v1656
        %v1832 = vunpack.c.l.b16 %v1657
        %v1833 = vunpack.c.h.b16 %v1657
        %v1834 = vunpack.c.l.b16 %v1658
        %v1835 = vunpack.c.h.b16 %v1658
        %v1836 = vunpack.c.l.b16 %v1659
        %v1837 = vunpack.c.h.b16 %v1659
        %v1838 = vunpack.c.l.b16 %v1660
        %v1839 = vunpack.c.h.b16 %v1660
        %v1840 = vunpack.c.l.b16 %v1661
        %v1841 = vunpack.c.h.b16 %v1661
        %v1842 = vunpack.c.l.b16 %v1662
        %v1843 = vunpack.c.h.b16 %v1662
        %v1844 = vunpack.c.l.b16 %v1663
        %v1845 = vunpack.c.h.b16 %v1663
        %v1846 = vunpack.c.l.b16 %v1664
        %v1847 = vunpack.c.h.b16 %v1664
        %v1848 = vunpack.c.l.b16 %v1665
        %v1849 = vunpack.c.h.b16 %v1665
        %v1850 = vunpack.c.l.b16 %v1666
        %v1851 = vunpack.c.h.b16 %v1666
        %v1852 = vunpack.c.l.b16 %v1667
        %v1853 = vunpack.c.h.b16 %v1667
        %v1854 = vunpack.c.l.b16 %v1668
        %v1855 = vunpack.c.h.b16 %v1668
        %v1856 = vunpack.c.l.b16 %v1669
        %v1857 = vunpack.c.h.b16 %v1669
        %v1858 = vunpack.c.l.b16 %v1670
        %v1859 = vunpack.c.h.b16 %v1670
        %v1860 = vunpack.c.l.b16 %v1671
        %v1861 = vunpack.c.h.b16 %v1671
        %v1862 = vunpack.c.l.b16 %v1672
        %v1863 = vunpack.c.h.b16 %v1672
        %v1864 = vunpack.c.l.b16 %v1673
        %v1865 = vunpack.c.h.b16 %v1673
        %v1866 = vpack.c.b16 %v1738, %v1738
        %v1867 = vpack.c.b16 %v1739, %v1739
        %v1868 = vpack.c.b16 %v1740, %v1740
        %v1869 = vpack.c.b16 %v1741, %v1741
        %v1870 = vpack.c.b16 %v1742, %v1742
        %v1871 = vpack.c.b16 %v1743, %v1743
        %v1872 = vpack.c.b16 %v1744, %v1744
        %v1873 = vpack.c.b16 %v1745, %v1745
        %v1874 = vpack.c.b16 %v1746, %v1746
        %v1875 = vpack.c.b16 %v1747, %v1747
        %v1876 = vpack.c.b16 %v1748, %v1748
        %v1877 = vpack.c.b16 %v1749, %v1749
        %v1878 = vpack.c.b16 %v1750, %v1750
        %v1879 = vpack.c.b16 %v1751, %v1751
        %v1880 = vpack.c.b16 %v1752, %v1752
        %v1881 = vpack.c.b16 %v1753, %v1753
        %v1882 = vpack.c.b16 %v1754, %v1754
        %v1883 = vpack.c.b16 %v1755, %v1755
        %v1884 = vpack.c.b16 %v1756, %v1756
        %v1885 = vpack.c.b16 %v1757, %v1757
        %v1886 = vpack.c.b16 %v1758, %v1758
        %v1887 = vpack.c.b16 %v1759, %v1759
        %v1888 = vpack.c.b16 %v1760, %v1760
        %v1889 = vpack.c.b16 %v1761, %v1761
        %v1890 = vpack.c.b16 %v1762, %v1762
        %v1891 = vpack.c.b16 %v1763, %v1763
        %v1892 = vpack.c.b16 %v1764, %v1764
        %v1893 = vpack.c.b16 %v1765, %v1765
        %v1894 = vpack.c.b16 %v1766, %v1766
        %v1895 = vpack.c.b16 %v1767, %v1767
        %v1896 = vpack.c.b16 %v1768, %v1768
        %v1897 = vpack.c.b16 %v1769, %v1769
        %v1898 = vpack.c.b16 %v1770, %v1770
        %v1899 = vpack.c.b16 %v1771, %v1771
        %v1900 = vpack.c.b16 %v1772, %v1772
        %v1901 = vpack.c.b16 %v1773, %v1773
        %v1902 = vpack.c.b16 %v1774, %v1774
        %v1903 = vpack.c.b16 %v1775, %v1775
        %v1904 = vpack.c.b16 %v1776, %v1776
        %v1905 = vpack.c.b16 %v1777, %v1777
        %v1906 = vpack.c.b16 %v1778, %v1778
        %v1907 = vpack.c.b16 %v1779, %v1779
        %v1908 = vpack.c.b16 %v1780, %v1780
        %v1909 = vpack.c.b16 %v1781, %v1781
        %v1910 = vpack.c.b16 %v1782, %v1782
        %v1911 = vpack.c.b16 %v1783, %v1783
        %v1912 = vpack.c.b16 %v1784, %v1784
        %v1913 = vpack.c.b16 %v1785, %v1785
        %v1914 = vpack.c.b16 %v1786, %v1786
        %v1915 = vpack.c.b16 %v1787, %v1787
        %v1916 = vpack.c.b16 %v1788, %v1788
        %v1917 = vpack.c.b16 %v1789, %v1789
        %v1918 = vpack.c.b16 %v1790, %v1790
        %v1919 = vpack.c.b16 %v1791, %v1791
        %v1920 = vpack.c.b16 %v1792, %v1792
        %v1921 = vpack.c.b16 %v1793, %v1793
        %v1922 = vpack.c.b16 %v1794, %v1794
        %v1923 = vpack.c.b16 %v1795, %v1795
        %v1924 = vpack.c.b16 %v1796, %v1796
        %v1925 = vpack.c.b16 %v1797, %v1797
        %v1926 = vpack.c.b16 %v1798, %v1798
        %v1927 = vpack.c.b16 %v1799, %v1799
        %v1928 = vpack.c.b16 %v1800, %v1800
        %v1929 = vpack.c.b16 %v1801, %v1801
        %v1930 = vpack.c.b16 %v1802, %v1802
        %v1931 = vpack.c.b16 %v1803, %v1803
        %v1932 = vpack.c.b16 %v1804, %v1804
        %v1933 = vpack.c.b16 %v1805, %v1805
        %v1934 = vpack.c.b16 %v1806, %v1806
        %v1935 = vpack.c.b16 %v1807, %v1807
        %v1936 = vpack.c.b16 %v1808, %v1808
        %v1937 = vpack.c.b16 %v1809, %v1809
        %v1938 = vpack.c.b16 %v1810, %v1810
        %v1939 = vpack.c.b16 %v1811, %v1811
        %v1940 = vpack.c.b16 %v1812, %v1812
        %v1941 = vpack.c.b16 %v1813, %v1813
        %v1942 = vpack.c.b16 %v1814, %v1814
        %v1943 = vpack.c.b16 %v1815, %v1815
        %v1944 = vpack.c.b16 %v1816, %v1816
        %v1945 = vpack.c.b16 %v1817, %v1817
        %v1946 = vpack.c.b16 %v1818, %v1818
        %v1947 = vpack.c.b16 %v1819, %v1819
        %v1948 = vpack.c.b16 %v1820, %v1820
        %v1949 = vpack.c.b16 %v1821, %v1821
        %v1950 = vpack.c.b16 %v1822, %v1822
        %v1951 = vpack.c.b16 %v1823, %v1823
        %v1952 = vpack.c.b16 %v1824, %v1824
        %v1953 = vpack.c.b16 %v1825, %v1825
        %v1954 = vpack.c.b16 %v1826, %v1826
        %v1955 = vpack.c.b16 %v1827, %v1827
        %v1956 = vpack.c.b16 %v1828, %v1828
        %v1957 = vpack.c.b16 %v1829, %v1829
        %v1958 = vpack.c.b16 %v1830, %v1830
        %v1959 = vpack.c.b16 %v1831, %v1831
        %v1960 = vpack.c.b16 %v1832, %v1832
        %v1961 = vpack.c.b16 %v1833, %v1833
        %v1962 = vpack.c.b16 %v1834, %v1834
        %v1963 = vpack.c.b16 %v1835, %v1835
        %v1964 = vpack.c.b16 %v1836, %v1836
        %v1965 = vpack.c.b16 %v1837, %v1837
        %v1966 = vpack.c.b16 %v1838, %v1838
        %v1967 = vpack.c.b16 %v1839, %v1839
        %v1968 = vpack.c.b16 %v1840, %v1840
        %v1969 = vpack.c.b16 %v1841, %v1841
        %v1970 = vpack.c.b16 %v1842, %v1842
        %v1971 = vpack.c.b16 %v1843, %v1843
        %v1972 = vpack.c.b16 %v1844, %v1844
        %v1973 = vpack.c.b16 %v1845, %v1845
        %v1974 = vpack.c.b16 %v1846, %v1846
        %v1975 = vpack.c.b16 %v1847, %v1847
        %v1976 = vpack.c.b16 %v1848, %v1848
        %v1977 = vpack.c.b16 %v1849, %v1849
        %v1978 = vpack.c.b16 %v1850, %v1850
        %v1979 = vpack.c.b16 %v1851, %v1851
        %v1980 = vpack.c.b16 %v1852, %v1852
        %v1981 = vpack.c.b16 %v1853, %v1853
        %v1982 = vpack.c.b16 %v1854, %v1854
        %v1983 = vpack.c.b16 %v1855, %v1855
        %v1984 = vpack.c.b16 %v1856, %v1856
        %v1985 = vpack.c.b16 %v1857, %v1857
        %v1986 = vpack.c.b16 %v1858, %v1858
        %v1987 = vpack.c.b16 %v1859, %v1859
        %v1988 = vpack.c.b16 %v1860, %v1860
        %v1989 = vpack.c.b16 %v1861, %v1861
        %v1990 = vpack.c.b16 %v1862, %v1862
        %v1991 = vpack.c.b16 %v1863, %v1863
        %v1992 = vpack.c.b16 %v1864, %v1864
        %v1993 = vpack.c.b16 %v1865, %v1865
        %vm2122 = vcmask 519168
        %2123 = vst.msk [vmem:[%s351] sm:$0xf] %vm2122, %v1866
        %2124 = vst.msk [vmem:[%s351 + $0x4] sm:$0xf] %vm2122, %v1867
        %2125 = vst.msk [vmem:[%s351 + $0x8] sm:$0xf] %vm2122, %v1868
        %2126 = vst.msk [vmem:[%s351 + $0xc] sm:$0xf] %vm2122, %v1869
        %2127 = vst.msk [vmem:[%s351 + $0x10] sm:$0xf] %vm2122, %v1870
        %2128 = vst.msk [vmem:[%s351 + $0x14] sm:$0xf] %vm2122, %v1871
        %2129 = vst.msk [vmem:[%s351 + $0x18] sm:$0xf] %vm2122, %v1872
        %2130 = vst.msk [vmem:[%s351 + $0x1c] sm:$0xf] %vm2122, %v1873
        %2131 = vst.msk [vmem:[%s351 + $0x20] sm:$0xf] %vm2122, %v1874
        %2132 = vst.msk [vmem:[%s351 + $0x24] sm:$0xf] %vm2122, %v1875
        %2133 = vst.msk [vmem:[%s351 + $0x28] sm:$0xf] %vm2122, %v1876
        %2134 = vst.msk [vmem:[%s351 + $0x2c] sm:$0xf] %vm2122, %v1877
        %2135 = vst.msk [vmem:[%s351 + $0x30] sm:$0xf] %vm2122, %v1878
        %2136 = vst.msk [vmem:[%s351 + $0x34] sm:$0xf] %vm2122, %v1879
        %2137 = vst.msk [vmem:[%s351 + $0x38] sm:$0xf] %vm2122, %v1880
        %2138 = vst.msk [vmem:[%s351 + $0x3c] sm:$0xf] %vm2122, %v1881
        %2139 = vst.msk [vmem:[%s351 + $0x40] sm:$0xf] %vm2122, %v1882
        %2140 = vst.msk [vmem:[%s351 + $0x44] sm:$0xf] %vm2122, %v1883
        %2141 = vst.msk [vmem:[%s351 + $0x48] sm:$0xf] %vm2122, %v1884
        %2142 = vst.msk [vmem:[%s351 + $0x4c] sm:$0xf] %vm2122, %v1885
        %2143 = vst.msk [vmem:[%s351 + $0x50] sm:$0xf] %vm2122, %v1886
        %2144 = vst.msk [vmem:[%s351 + $0x54] sm:$0xf] %vm2122, %v1887
        %2145 = vst.msk [vmem:[%s351 + $0x58] sm:$0xf] %vm2122, %v1888
        %2146 = vst.msk [vmem:[%s351 + $0x5c] sm:$0xf] %vm2122, %v1889
        %2147 = vst.msk [vmem:[%s351 + $0x60] sm:$0xf] %vm2122, %v1890
        %2148 = vst.msk [vmem:[%s351 + $0x64] sm:$0xf] %vm2122, %v1891
        %2149 = vst.msk [vmem:[%s351 + $0x68] sm:$0xf] %vm2122, %v1892
        %2150 = vst.msk [vmem:[%s351 + $0x6c] sm:$0xf] %vm2122, %v1893
        %2151 = vst.msk [vmem:[%s351 + $0x70] sm:$0xf] %vm2122, %v1894
        %2152 = vst.msk [vmem:[%s351 + $0x74] sm:$0xf] %vm2122, %v1895
        %2153 = vst.msk [vmem:[%s351 + $0x78] sm:$0xf] %vm2122, %v1896
        %2154 = vst.msk [vmem:[%s351 + $0x7c] sm:$0xf] %vm2122, %v1897
        %2155 = vst.msk [vmem:[%s351 + $0x80] sm:$0xf] %vm2122, %v1898
        %2156 = vst.msk [vmem:[%s351 + $0x84] sm:$0xf] %vm2122, %v1899
        %2157 = vst.msk [vmem:[%s351 + $0x88] sm:$0xf] %vm2122, %v1900
        %2158 = vst.msk [vmem:[%s351 + $0x8c] sm:$0xf] %vm2122, %v1901
        %2159 = vst.msk [vmem:[%s351 + $0x90] sm:$0xf] %vm2122, %v1902
        %2160 = vst.msk [vmem:[%s351 + $0x94] sm:$0xf] %vm2122, %v1903
        %2161 = vst.msk [vmem:[%s351 + $0x98] sm:$0xf] %vm2122, %v1904
        %2162 = vst.msk [vmem:[%s351 + $0x9c] sm:$0xf] %vm2122, %v1905
        %2163 = vst.msk [vmem:[%s351 + $0xa0] sm:$0xf] %vm2122, %v1906
        %2164 = vst.msk [vmem:[%s351 + $0xa4] sm:$0xf] %vm2122, %v1907
        %2165 = vst.msk [vmem:[%s351 + $0xa8] sm:$0xf] %vm2122, %v1908
        %2166 = vst.msk [vmem:[%s351 + $0xac] sm:$0xf] %vm2122, %v1909
        %2167 = vst.msk [vmem:[%s351 + $0xb0] sm:$0xf] %vm2122, %v1910
        %2168 = vst.msk [vmem:[%s351 + $0xb4] sm:$0xf] %vm2122, %v1911
        %2169 = vst.msk [vmem:[%s351 + $0xb8] sm:$0xf] %vm2122, %v1912
        %2170 = vst.msk [vmem:[%s351 + $0xbc] sm:$0xf] %vm2122, %v1913
        %2171 = vst.msk [vmem:[%s351 + $0xc0] sm:$0xf] %vm2122, %v1914
        %2172 = vst.msk [vmem:[%s351 + $0xc4] sm:$0xf] %vm2122, %v1915
        %2173 = vst.msk [vmem:[%s351 + $0xc8] sm:$0xf] %vm2122, %v1916
        %2174 = vst.msk [vmem:[%s351 + $0xcc] sm:$0xf] %vm2122, %v1917
        %2175 = vst.msk [vmem:[%s351 + $0xd0] sm:$0xf] %vm2122, %v1918
        %2176 = vst.msk [vmem:[%s351 + $0xd4] sm:$0xf] %vm2122, %v1919
        %2177 = vst.msk [vmem:[%s351 + $0xd8] sm:$0xf] %vm2122, %v1920
        %2178 = vst.msk [vmem:[%s351 + $0xdc] sm:$0xf] %vm2122, %v1921
        %2179 = vst.msk [vmem:[%s351 + $0xe0] sm:$0xf] %vm2122, %v1922
        %2180 = vst.msk [vmem:[%s351 + $0xe4] sm:$0xf] %vm2122, %v1923
        %2181 = vst.msk [vmem:[%s351 + $0xe8] sm:$0xf] %vm2122, %v1924
        %2182 = vst.msk [vmem:[%s351 + $0xec] sm:$0xf] %vm2122, %v1925
        %2183 = vst.msk [vmem:[%s351 + $0xf0] sm:$0xf] %vm2122, %v1926
        %2184 = vst.msk [vmem:[%s351 + $0xf4] sm:$0xf] %vm2122, %v1927
        %2185 = vst.msk [vmem:[%s351 + $0xf8] sm:$0xf] %vm2122, %v1928
        %2186 = vst.msk [vmem:[%s351 + $0xfc] sm:$0xf] %vm2122, %v1929
        %2187 = vst.msk [vmem:[%s351 + $0x100] sm:$0xf] %vm2122, %v1930
        %2188 = vst.msk [vmem:[%s351 + $0x104] sm:$0xf] %vm2122, %v1931
        %2189 = vst.msk [vmem:[%s351 + $0x108] sm:$0xf] %vm2122, %v1932
        %2190 = vst.msk [vmem:[%s351 + $0x10c] sm:$0xf] %vm2122, %v1933
        %2191 = vst.msk [vmem:[%s351 + $0x110] sm:$0xf] %vm2122, %v1934
        %2192 = vst.msk [vmem:[%s351 + $0x114] sm:$0xf] %vm2122, %v1935
        %2193 = vst.msk [vmem:[%s351 + $0x118] sm:$0xf] %vm2122, %v1936
        %2194 = vst.msk [vmem:[%s351 + $0x11c] sm:$0xf] %vm2122, %v1937
        %2195 = vst.msk [vmem:[%s351 + $0x120] sm:$0xf] %vm2122, %v1938
        %2196 = vst.msk [vmem:[%s351 + $0x124] sm:$0xf] %vm2122, %v1939
        %2197 = vst.msk [vmem:[%s351 + $0x128] sm:$0xf] %vm2122, %v1940
        %2198 = vst.msk [vmem:[%s351 + $0x12c] sm:$0xf] %vm2122, %v1941
        %2199 = vst.msk [vmem:[%s351 + $0x130] sm:$0xf] %vm2122, %v1942
        %2200 = vst.msk [vmem:[%s351 + $0x134] sm:$0xf] %vm2122, %v1943
        %2201 = vst.msk [vmem:[%s351 + $0x138] sm:$0xf] %vm2122, %v1944
        %2202 = vst.msk [vmem:[%s351 + $0x13c] sm:$0xf] %vm2122, %v1945
        %2203 = vst.msk [vmem:[%s351 + $0x140] sm:$0xf] %vm2122, %v1946
        %2204 = vst.msk [vmem:[%s351 + $0x144] sm:$0xf] %vm2122, %v1947
        %2205 = vst.msk [vmem:[%s351 + $0x148] sm:$0xf] %vm2122, %v1948
        %2206 = vst.msk [vmem:[%s351 + $0x14c] sm:$0xf] %vm2122, %v1949
        %2207 = vst.msk [vmem:[%s351 + $0x150] sm:$0xf] %vm2122, %v1950
        %2208 = vst.msk [vmem:[%s351 + $0x154] sm:$0xf] %vm2122, %v1951
        %2209 = vst.msk [vmem:[%s351 + $0x158] sm:$0xf] %vm2122, %v1952
        %2210 = vst.msk [vmem:[%s351 + $0x15c] sm:$0xf] %vm2122, %v1953
        %2211 = vst.msk [vmem:[%s351 + $0x160] sm:$0xf] %vm2122, %v1954
        %2212 = vst.msk [vmem:[%s351 + $0x164] sm:$0xf] %vm2122, %v1955
        %2213 = vst.msk [vmem:[%s351 + $0x168] sm:$0xf] %vm2122, %v1956
        %2214 = vst.msk [vmem:[%s351 + $0x16c] sm:$0xf] %vm2122, %v1957
        %2215 = vst.msk [vmem:[%s351 + $0x170] sm:$0xf] %vm2122, %v1958
        %2216 = vst.msk [vmem:[%s351 + $0x174] sm:$0xf] %vm2122, %v1959
        %2217 = vst.msk [vmem:[%s351 + $0x178] sm:$0xf] %vm2122, %v1960
        %2218 = vst.msk [vmem:[%s351 + $0x17c] sm:$0xf] %vm2122, %v1961
        %2219 = vst.msk [vmem:[%s351 + $0x180] sm:$0xf] %vm2122, %v1962
        %2220 = vst.msk [vmem:[%s351 + $0x184] sm:$0xf] %vm2122, %v1963
        %2221 = vst.msk [vmem:[%s351 + $0x188] sm:$0xf] %vm2122, %v1964
        %2222 = vst.msk [vmem:[%s351 + $0x18c] sm:$0xf] %vm2122, %v1965
        %2223 = vst.msk [vmem:[%s351 + $0x190] sm:$0xf] %vm2122, %v1966
        %2224 = vst.msk [vmem:[%s351 + $0x194] sm:$0xf] %vm2122, %v1967
        %2225 = vst.msk [vmem:[%s351 + $0x198] sm:$0xf] %vm2122, %v1968
        %2226 = vst.msk [vmem:[%s351 + $0x19c] sm:$0xf] %vm2122, %v1969
        %2227 = vst.msk [vmem:[%s351 + $0x1a0] sm:$0xf] %vm2122, %v1970
        %2228 = vst.msk [vmem:[%s351 + $0x1a4] sm:$0xf] %vm2122, %v1971
        %2229 = vst.msk [vmem:[%s351 + $0x1a8] sm:$0xf] %vm2122, %v1972
        %2230 = vst.msk [vmem:[%s351 + $0x1ac] sm:$0xf] %vm2122, %v1973
        %2231 = vst.msk [vmem:[%s351 + $0x1b0] sm:$0xf] %vm2122, %v1974
        %2232 = vst.msk [vmem:[%s351 + $0x1b4] sm:$0xf] %vm2122, %v1975
        %2233 = vst.msk [vmem:[%s351 + $0x1b8] sm:$0xf] %vm2122, %v1976
        %2234 = vst.msk [vmem:[%s351 + $0x1bc] sm:$0xf] %vm2122, %v1977
        %2235 = vst.msk [vmem:[%s351 + $0x1c0] sm:$0xf] %vm2122, %v1978
        %2236 = vst.msk [vmem:[%s351 + $0x1c4] sm:$0xf] %vm2122, %v1979
        %2237 = vst.msk [vmem:[%s351 + $0x1c8] sm:$0xf] %vm2122, %v1980
        %2238 = vst.msk [vmem:[%s351 + $0x1cc] sm:$0xf] %vm2122, %v1981
        %2239 = vst.msk [vmem:[%s351 + $0x1d0] sm:$0xf] %vm2122, %v1982
        %2240 = vst.msk [vmem:[%s351 + $0x1d4] sm:$0xf] %vm2122, %v1983
        %2241 = vst.msk [vmem:[%s351 + $0x1d8] sm:$0xf] %vm2122, %v1984
        %2242 = vst.msk [vmem:[%s351 + $0x1dc] sm:$0xf] %vm2122, %v1985
        %2243 = vst.msk [vmem:[%s351 + $0x1e0] sm:$0xf] %vm2122, %v1986
        %2244 = vst.msk [vmem:[%s351 + $0x1e4] sm:$0xf] %vm2122, %v1987
        %2245 = vst.msk [vmem:[%s351 + $0x1e8] sm:$0xf] %vm2122, %v1988
        %2246 = vst.msk [vmem:[%s351 + $0x1ec] sm:$0xf] %vm2122, %v1989
        %2247 = vst.msk [vmem:[%s351 + $0x1f0] sm:$0xf] %vm2122, %v1990
        %2248 = vst.msk [vmem:[%s351 + $0x1f4] sm:$0xf] %vm2122, %v1991
        %2249 = vst.msk [vmem:[%s351 + $0x1f8] sm:$0xf] %vm2122, %v1992
        %2250 = vst.msk [vmem:[%s351 + $0x1fc] sm:$0xf] %vm2122, %v1993
        %vm2251 = vcmask 523264
        %v2252 = vsel %vm2251, %v1482, 0.0
        %v2253 = vsel %vm2251, %v1483, 0.0
        %v2254 = vadd.f32 %v2252, %v2253
        %v2255 = vsel %vm2251, %v1484, 0.0
        %v2256 = vadd.f32 %v2254, %v2255
        %v2257 = vsel %vm2251, %v1485, 0.0
        %v2258 = vadd.f32 %v2256, %v2257
        %v2259 = vsel %vm2251, %v1486, 0.0
        %v2260 = vadd.f32 %v2258, %v2259
        %v2261 = vsel %vm2251, %v1487, 0.0
        %v2262 = vadd.f32 %v2260, %v2261
        %v2263 = vsel %vm2251, %v1488, 0.0
        %v2264 = vadd.f32 %v2262, %v2263
        %v2265 = vsel %vm2251, %v1489, 0.0
        %v2266 = vadd.f32 %v2264, %v2265
        %v2267 = vsel %vm2251, %v1490, 0.0
        %v2268 = vadd.f32 %v2266, %v2267
        %v2269 = vsel %vm2251, %v1491, 0.0
        %v2270 = vadd.f32 %v2268, %v2269
        %v2271 = vsel %vm2251, %v1492, 0.0
        %v2272 = vadd.f32 %v2270, %v2271
        %v2273 = vsel %vm2251, %v1493, 0.0
        %v2274 = vadd.f32 %v2272, %v2273
        %v2275 = vsel %vm2251, %v1494, 0.0
        %v2276 = vadd.f32 %v2274, %v2275
        %v2277 = vsel %vm2251, %v1495, 0.0
        %v2278 = vadd.f32 %v2276, %v2277
        %v2279 = vsel %vm2251, %v1496, 0.0
        %v2280 = vadd.f32 %v2278, %v2279
        %v2281 = vsel %vm2251, %v1497, 0.0
        %v2282 = vadd.f32 %v2280, %v2281
        %v2283 = vsel %vm2251, %v1498, 0.0
        %v2284 = vadd.f32 %v2282, %v2283
        %v2285 = vsel %vm2251, %v1499, 0.0
        %v2286 = vadd.f32 %v2284, %v2285
        %v2287 = vsel %vm2251, %v1500, 0.0
        %v2288 = vadd.f32 %v2286, %v2287
        %v2289 = vsel %vm2251, %v1501, 0.0
        %v2290 = vadd.f32 %v2288, %v2289
        %v2291 = vsel %vm2251, %v1502, 0.0
        %v2292 = vadd.f32 %v2290, %v2291
        %v2293 = vsel %vm2251, %v1503, 0.0
        %v2294 = vadd.f32 %v2292, %v2293
        %v2295 = vsel %vm2251, %v1504, 0.0
        %v2296 = vadd.f32 %v2294, %v2295
        %v2297 = vsel %vm2251, %v1505, 0.0
        %v2298 = vadd.f32 %v2296, %v2297
        %v2299 = vsel %vm2251, %v1506, 0.0
        %v2300 = vadd.f32 %v2298, %v2299
        %v2301 = vsel %vm2251, %v1507, 0.0
        %v2302 = vadd.f32 %v2300, %v2301
        %v2303 = vsel %vm2251, %v1508, 0.0
        %v2304 = vadd.f32 %v2302, %v2303
        %v2305 = vsel %vm2251, %v1509, 0.0
        %v2306 = vadd.f32 %v2304, %v2305
        %v2307 = vsel %vm2251, %v1510, 0.0
        %v2308 = vadd.f32 %v2306, %v2307
        %v2309 = vsel %vm2251, %v1511, 0.0
        %v2310 = vadd.f32 %v2308, %v2309
        %v2311 = vsel %vm2251, %v1512, 0.0
        %v2312 = vadd.f32 %v2310, %v2311
        %v2313 = vsel %vm2251, %v1513, 0.0
        %v2314 = vadd.f32 %v2312, %v2313
        %v2315 = vsel %vm2251, %v1514, 0.0
        %v2316 = vadd.f32 %v2314, %v2315
        %v2317 = vsel %vm2251, %v1515, 0.0
        %v2318 = vadd.f32 %v2316, %v2317
        %v2319 = vsel %vm2251, %v1516, 0.0
        %v2320 = vadd.f32 %v2318, %v2319
        %v2321 = vsel %vm2251, %v1517, 0.0
        %v2322 = vadd.f32 %v2320, %v2321
        %v2323 = vsel %vm2251, %v1518, 0.0
        %v2324 = vadd.f32 %v2322, %v2323
        %v2325 = vsel %vm2251, %v1519, 0.0
        %v2326 = vadd.f32 %v2324, %v2325
        %v2327 = vsel %vm2251, %v1520, 0.0
        %v2328 = vadd.f32 %v2326, %v2327
        %v2329 = vsel %vm2251, %v1521, 0.0
        %v2330 = vadd.f32 %v2328, %v2329
        %v2331 = vsel %vm2251, %v1522, 0.0
        %v2332 = vadd.f32 %v2330, %v2331
        %v2333 = vsel %vm2251, %v1523, 0.0
        %v2334 = vadd.f32 %v2332, %v2333
        %v2335 = vsel %vm2251, %v1524, 0.0
        %v2336 = vadd.f32 %v2334, %v2335
        %v2337 = vsel %vm2251, %v1525, 0.0
        %v2338 = vadd.f32 %v2336, %v2337
        %v2339 = vsel %vm2251, %v1526, 0.0
        %v2340 = vadd.f32 %v2338, %v2339
        %v2341 = vsel %vm2251, %v1527, 0.0
        %v2342 = vadd.f32 %v2340, %v2341
        %v2343 = vsel %vm2251, %v1528, 0.0
        %v2344 = vadd.f32 %v2342, %v2343
        %v2345 = vsel %vm2251, %v1529, 0.0
        %v2346 = vadd.f32 %v2344, %v2345
        %v2347 = vsel %vm2251, %v1530, 0.0
        %v2348 = vadd.f32 %v2346, %v2347
        %v2349 = vsel %vm2251, %v1531, 0.0
        %v2350 = vadd.f32 %v2348, %v2349
        %v2351 = vsel %vm2251, %v1532, 0.0
        %v2352 = vadd.f32 %v2350, %v2351
        %v2353 = vsel %vm2251, %v1533, 0.0
        %v2354 = vadd.f32 %v2352, %v2353
        %v2355 = vsel %vm2251, %v1534, 0.0
        %v2356 = vadd.f32 %v2354, %v2355
        %v2357 = vsel %vm2251, %v1535, 0.0
        %v2358 = vadd.f32 %v2356, %v2357
        %v2359 = vsel %vm2251, %v1536, 0.0
        %v2360 = vadd.f32 %v2358, %v2359
        %v2361 = vsel %vm2251, %v1537, 0.0
        %v2362 = vadd.f32 %v2360, %v2361
        %v2363 = vsel %vm2251, %v1538, 0.0
        %v2364 = vadd.f32 %v2362, %v2363
        %v2365 = vsel %vm2251, %v1539, 0.0
        %v2366 = vadd.f32 %v2364, %v2365
        %v2367 = vsel %vm2251, %v1540, 0.0
        %v2368 = vadd.f32 %v2366, %v2367
        %v2369 = vsel %vm2251, %v1541, 0.0
        %v2370 = vadd.f32 %v2368, %v2369
        %v2371 = vsel %vm2251, %v1542, 0.0
        %v2372 = vadd.f32 %v2370, %v2371
        %v2373 = vsel %vm2251, %v1543, 0.0
        %v2374 = vadd.f32 %v2372, %v2373
        %v2375 = vsel %vm2251, %v1544, 0.0
        %v2376 = vadd.f32 %v2374, %v2375
        %v2377 = vsel %vm2251, %v1545, 0.0
        %v2378 = vadd.f32 %v2376, %v2377
        %v2379 = vsel %vm2251, %v1546, 0.0
        %v2380 = vadd.f32 %v2378, %v2379
        %v2381 = vsel %vm2251, %v1547, 0.0
        %v2382 = vadd.f32 %v2380, %v2381
        %v2383 = vsel %vm2251, %v1548, 0.0
        %v2384 = vadd.f32 %v2382, %v2383
        %v2385 = vsel %vm2251, %v1549, 0.0
        %v2386 = vadd.f32 %v2384, %v2385
        %v2387 = vsel %vm2251, %v1550, 0.0
        %v2388 = vadd.f32 %v2386, %v2387
        %v2389 = vsel %vm2251, %v1551, 0.0
        %v2390 = vadd.f32 %v2388, %v2389
        %v2391 = vsel %vm2251, %v1552, 0.0
        %v2392 = vadd.f32 %v2390, %v2391
        %v2393 = vsel %vm2251, %v1553, 0.0
        %v2394 = vadd.f32 %v2392, %v2393
        %v2395 = vsel %vm2251, %v1554, 0.0
        %v2396 = vadd.f32 %v2394, %v2395
        %v2397 = vsel %vm2251, %v1555, 0.0
        %v2398 = vadd.f32 %v2396, %v2397
        %v2399 = vsel %vm2251, %v1556, 0.0
        %v2400 = vadd.f32 %v2398, %v2399
        %v2401 = vsel %vm2251, %v1557, 0.0
        %v2402 = vadd.f32 %v2400, %v2401
        %v2403 = vsel %vm2251, %v1558, 0.0
        %v2404 = vadd.f32 %v2402, %v2403
        %v2405 = vsel %vm2251, %v1559, 0.0
        %v2406 = vadd.f32 %v2404, %v2405
        %v2407 = vsel %vm2251, %v1560, 0.0
        %v2408 = vadd.f32 %v2406, %v2407
        %v2409 = vsel %vm2251, %v1561, 0.0
        %v2410 = vadd.f32 %v2408, %v2409
        %v2411 = vsel %vm2251, %v1562, 0.0
        %v2412 = vadd.f32 %v2410, %v2411
        %v2413 = vsel %vm2251, %v1563, 0.0
        %v2414 = vadd.f32 %v2412, %v2413
        %v2415 = vsel %vm2251, %v1564, 0.0
        %v2416 = vadd.f32 %v2414, %v2415
        %v2417 = vsel %vm2251, %v1565, 0.0
        %v2418 = vadd.f32 %v2416, %v2417
        %v2419 = vsel %vm2251, %v1566, 0.0
        %v2420 = vadd.f32 %v2418, %v2419
        %v2421 = vsel %vm2251, %v1567, 0.0
        %v2422 = vadd.f32 %v2420, %v2421
        %v2423 = vsel %vm2251, %v1568, 0.0
        %v2424 = vadd.f32 %v2422, %v2423
        %v2425 = vsel %vm2251, %v1569, 0.0
        %v2426 = vadd.f32 %v2424, %v2425
        %v2427 = vsel %vm2251, %v1570, 0.0
        %v2428 = vadd.f32 %v2426, %v2427
        %v2429 = vsel %vm2251, %v1571, 0.0
        %v2430 = vadd.f32 %v2428, %v2429
        %v2431 = vsel %vm2251, %v1572, 0.0
        %v2432 = vadd.f32 %v2430, %v2431
        %v2433 = vsel %vm2251, %v1573, 0.0
        %v2434 = vadd.f32 %v2432, %v2433
        %v2435 = vsel %vm2251, %v1574, 0.0
        %v2436 = vadd.f32 %v2434, %v2435
        %v2437 = vsel %vm2251, %v1575, 0.0
        %v2438 = vadd.f32 %v2436, %v2437
        %v2439 = vsel %vm2251, %v1576, 0.0
        %v2440 = vadd.f32 %v2438, %v2439
        %v2441 = vsel %vm2251, %v1577, 0.0
        %v2442 = vadd.f32 %v2440, %v2441
        %v2443 = vsel %vm2251, %v1578, 0.0
        %v2444 = vadd.f32 %v2442, %v2443
        %v2445 = vsel %vm2251, %v1579, 0.0
        %v2446 = vadd.f32 %v2444, %v2445
        %v2447 = vsel %vm2251, %v1580, 0.0
        %v2448 = vadd.f32 %v2446, %v2447
        %v2449 = vsel %vm2251, %v1581, 0.0
        %v2450 = vadd.f32 %v2448, %v2449
        %v2451 = vsel %vm2251, %v1582, 0.0
        %v2452 = vadd.f32 %v2450, %v2451
        %v2453 = vsel %vm2251, %v1583, 0.0
        %v2454 = vadd.f32 %v2452, %v2453
        %v2455 = vsel %vm2251, %v1584, 0.0
        %v2456 = vadd.f32 %v2454, %v2455
        %v2457 = vsel %vm2251, %v1585, 0.0
        %v2458 = vadd.f32 %v2456, %v2457
        %v2459 = vsel %vm2251, %v1586, 0.0
        %v2460 = vadd.f32 %v2458, %v2459
        %v2461 = vsel %vm2251, %v1587, 0.0
        %v2462 = vadd.f32 %v2460, %v2461
        %v2463 = vsel %vm2251, %v1588, 0.0
        %v2464 = vadd.f32 %v2462, %v2463
        %v2465 = vsel %vm2251, %v1589, 0.0
        %v2466 = vadd.f32 %v2464, %v2465
        %v2467 = vsel %vm2251, %v1590, 0.0
        %v2468 = vadd.f32 %v2466, %v2467
        %v2469 = vsel %vm2251, %v1591, 0.0
        %v2470 = vadd.f32 %v2468, %v2469
        %v2471 = vsel %vm2251, %v1592, 0.0
        %v2472 = vadd.f32 %v2470, %v2471
        %v2473 = vsel %vm2251, %v1593, 0.0
        %v2474 = vadd.f32 %v2472, %v2473
        %v2475 = vsel %vm2251, %v1594, 0.0
        %v2476 = vadd.f32 %v2474, %v2475
        %v2477 = vsel %vm2251, %v1595, 0.0
        %v2478 = vadd.f32 %v2476, %v2477
        %v2479 = vsel %vm2251, %v1596, 0.0
        %v2480 = vadd.f32 %v2478, %v2479
        %v2481 = vsel %vm2251, %v1597, 0.0
        %v2482 = vadd.f32 %v2480, %v2481
        %v2483 = vsel %vm2251, %v1598, 0.0
        %v2484 = vadd.f32 %v2482, %v2483
        %v2485 = vsel %vm2251, %v1599, 0.0
        %v2486 = vadd.f32 %v2484, %v2485
        %v2487 = vsel %vm2251, %v1600, 0.0
        %v2488 = vadd.f32 %v2486, %v2487
        %v2489 = vsel %vm2251, %v1601, 0.0
        %v2490 = vadd.f32 %v2488, %v2489
        %v2491 = vsel %vm2251, %v1602, 0.0
        %v2492 = vadd.f32 %v2490, %v2491
        %v2493 = vsel %vm2251, %v1603, 0.0
        %v2494 = vadd.f32 %v2492, %v2493
        %v2495 = vsel %vm2251, %v1604, 0.0
        %v2496 = vadd.f32 %v2494, %v2495
        %v2497 = vsel %vm2251, %v1605, 0.0
        %v2498 = vadd.f32 %v2496, %v2497
        %v2499 = vsel %vm2251, %v1606, 0.0
        %v2500 = vadd.f32 %v2498, %v2499
        %v2501 = vsel %vm2251, %v1607, 0.0
        %v2502 = vadd.f32 %v2500, %v2501
        %v2503 = vsel %vm2251, %v1608, 0.0
        %v2504 = vadd.f32 %v2502, %v2503
        %v2505 = vsel %vm2251, %v1609, 0.0
        %v2506 = vadd.f32 %v2504, %v2505
        %v2507 = vrot.slane %v2506, 4
        %v2508 = vadd.f32 %v2506, %v2507
        %v2509 = vrot.slane %v2508, 2
        %v2510 = vadd.f32 %v2508, %v2509
        %v2511 = vrot.slane %v2510, 1
        %v2512 = vadd.f32 %v2510, %v2511
        %vm2513 = vcmask 516096
        %2514 = vst.msk [vmem:[%s327] sm:$0x1] %vm2513, %v2512
        %v2515 = vmul.f32 %v1482, %v1482
        %v2516 = vmul.f32 %v1483, %v1483
        %v2517 = vmul.f32 %v1484, %v1484
        %v2518 = vmul.f32 %v1485, %v1485
        %v2519 = vmul.f32 %v1486, %v1486
        %v2520 = vmul.f32 %v1487, %v1487
        %v2521 = vmul.f32 %v1488, %v1488
        %v2522 = vmul.f32 %v1489, %v1489
        %v2523 = vmul.f32 %v1490, %v1490
        %v2524 = vmul.f32 %v1491, %v1491
        %v2525 = vmul.f32 %v1492, %v1492
        %v2526 = vmul.f32 %v1493, %v1493
        %v2527 = vmul.f32 %v1494, %v1494
        %v2528 = vmul.f32 %v1495, %v1495
        %v2529 = vmul.f32 %v1496, %v1496
        %v2530 = vmul.f32 %v1497, %v1497
        %v2531 = vmul.f32 %v1498, %v1498
        %v2532 = vmul.f32 %v1499, %v1499
        %v2533 = vmul.f32 %v1500, %v1500
        %v2534 = vmul.f32 %v1501, %v1501
        %v2535 = vmul.f32 %v1502, %v1502
        %v2536 = vmul.f32 %v1503, %v1503
        %v2537 = vmul.f32 %v1504, %v1504
        %v2538 = vmul.f32 %v1505, %v1505
        %v2539 = vmul.f32 %v1506, %v1506
        %v2540 = vmul.f32 %v1507, %v1507
        %v2541 = vmul.f32 %v1508, %v1508
        %v2542 = vmul.f32 %v1509, %v1509
        %v2543 = vmul.f32 %v1510, %v1510
        %v2544 = vmul.f32 %v1511, %v1511
        %v2545 = vmul.f32 %v1512, %v1512
        %v2546 = vmul.f32 %v1513, %v1513
        %v2547 = vmul.f32 %v1514, %v1514
        %v2548 = vmul.f32 %v1515, %v1515
        %v2549 = vmul.f32 %v1516, %v1516
        %v2550 = vmul.f32 %v1517, %v1517
        %v2551 = vmul.f32 %v1518, %v1518
        %v2552 = vmul.f32 %v1519, %v1519
        %v2553 = vmul.f32 %v1520, %v1520
        %v2554 = vmul.f32 %v1521, %v1521
        %v2555 = vmul.f32 %v1522, %v1522
        %v2556 = vmul.f32 %v1523, %v1523
        %v2557 = vmul.f32 %v1524, %v1524
        %v2558 = vmul.f32 %v1525, %v1525
        %v2559 = vmul.f32 %v1526, %v1526
        %v2560 = vmul.f32 %v1527, %v1527
        %v2561 = vmul.f32 %v1528, %v1528
        %v2562 = vmul.f32 %v1529, %v1529
        %v2563 = vmul.f32 %v1530, %v1530
        %v2564 = vmul.f32 %v1531, %v1531
        %v2565 = vmul.f32 %v1532, %v1532
        %v2566 = vmul.f32 %v1533, %v1533
        %v2567 = vmul.f32 %v1534, %v1534
        %v2568 = vmul.f32 %v1535, %v1535
        %v2569 = vmul.f32 %v1536, %v1536
        %v2570 = vmul.f32 %v1537, %v1537
        %v2571 = vmul.f32 %v1538, %v1538
        %v2572 = vmul.f32 %v1539, %v1539
        %v2573 = vmul.f32 %v1540, %v1540
        %v2574 = vmul.f32 %v1541, %v1541
        %v2575 = vmul.f32 %v1542, %v1542
        %v2576 = vmul.f32 %v1543, %v1543
        %v2577 = vmul.f32 %v1544, %v1544
        %v2578 = vmul.f32 %v1545, %v1545
        %v2579 = vmul.f32 %v1546, %v1546
        %v2580 = vmul.f32 %v1547, %v1547
        %v2581 = vmul.f32 %v1548, %v1548
        %v2582 = vmul.f32 %v1549, %v1549
        %v2583 = vmul.f32 %v1550, %v1550
        %v2584 = vmul.f32 %v1551, %v1551
        %v2585 = vmul.f32 %v1552, %v1552
        %v2586 = vmul.f32 %v1553, %v1553
        %v2587 = vmul.f32 %v1554, %v1554
        %v2588 = vmul.f32 %v1555, %v1555
        %v2589 = vmul.f32 %v1556, %v1556
        %v2590 = vmul.f32 %v1557, %v1557
        %v2591 = vmul.f32 %v1558, %v1558
        %v2592 = vmul.f32 %v1559, %v1559
        %v2593 = vmul.f32 %v1560, %v1560
        %v2594 = vmul.f32 %v1561, %v1561
        %v2595 = vmul.f32 %v1562, %v1562
        %v2596 = vmul.f32 %v1563, %v1563
        %v2597 = vmul.f32 %v1564, %v1564
        %v2598 = vmul.f32 %v1565, %v1565
        %v2599 = vmul.f32 %v1566, %v1566
        %v2600 = vmul.f32 %v1567, %v1567
        %v2601 = vmul.f32 %v1568, %v1568
        %v2602 = vmul.f32 %v1569, %v1569
        %v2603 = vmul.f32 %v1570, %v1570
        %v2604 = vmul.f32 %v1571, %v1571
        %v2605 = vmul.f32 %v1572, %v1572
        %v2606 = vmul.f32 %v1573, %v1573
        %v2607 = vmul.f32 %v1574, %v1574
        %v2608 = vmul.f32 %v1575, %v1575
        %v2609 = vmul.f32 %v1576, %v1576
        %v2610 = vmul.f32 %v1577, %v1577
        %v2611 = vmul.f32 %v1578, %v1578
        %v2612 = vmul.f32 %v1579, %v1579
        %v2613 = vmul.f32 %v1580, %v1580
        %v2614 = vmul.f32 %v1581, %v1581
        %v2615 = vmul.f32 %v1582, %v1582
        %v2616 = vmul.f32 %v1583, %v1583
        %v2617 = vmul.f32 %v1584, %v1584
        %v2618 = vmul.f32 %v1585, %v1585
        %v2619 = vmul.f32 %v1586, %v1586
        %v2620 = vmul.f32 %v1587, %v1587
        %v2621 = vmul.f32 %v1588, %v1588
        %v2622 = vmul.f32 %v1589, %v1589
        %v2623 = vmul.f32 %v1590, %v1590
        %v2624 = vmul.f32 %v1591, %v1591
        %v2625 = vmul.f32 %v1592, %v1592
        %v2626 = vmul.f32 %v1593, %v1593
        %v2627 = vmul.f32 %v1594, %v1594
        %v2628 = vmul.f32 %v1595, %v1595
        %v2629 = vmul.f32 %v1596, %v1596
        %v2630 = vmul.f32 %v1597, %v1597
        %v2631 = vmul.f32 %v1598, %v1598
        %v2632 = vmul.f32 %v1599, %v1599
        %v2633 = vmul.f32 %v1600, %v1600
        %v2634 = vmul.f32 %v1601, %v1601
        %v2635 = vmul.f32 %v1602, %v1602
        %v2636 = vmul.f32 %v1603, %v1603
        %v2637 = vmul.f32 %v1604, %v1604
        %v2638 = vmul.f32 %v1605, %v1605
        %v2639 = vmul.f32 %v1606, %v1606
        %v2640 = vmul.f32 %v1607, %v1607
        %v2641 = vmul.f32 %v1608, %v1608
        %v2642 = vmul.f32 %v1609, %v1609
        %v2643 = vsel %vm2251, %v2515, 0.0
        %v2644 = vsel %vm2251, %v2516, 0.0
        %v2645 = vadd.f32 %v2643, %v2644
        %v2646 = vsel %vm2251, %v2517, 0.0
        %v2647 = vadd.f32 %v2645, %v2646
        %v2648 = vsel %vm2251, %v2518, 0.0
        %v2649 = vadd.f32 %v2647, %v2648
        %v2650 = vsel %vm2251, %v2519, 0.0
        %v2651 = vadd.f32 %v2649, %v2650
        %v2652 = vsel %vm2251, %v2520, 0.0
        %v2653 = vadd.f32 %v2651, %v2652
        %v2654 = vsel %vm2251, %v2521, 0.0
        %v2655 = vadd.f32 %v2653, %v2654
        %v2656 = vsel %vm2251, %v2522, 0.0
        %v2657 = vadd.f32 %v2655, %v2656
        %v2658 = vsel %vm2251, %v2523, 0.0
        %v2659 = vadd.f32 %v2657, %v2658
        %v2660 = vsel %vm2251, %v2524, 0.0
        %v2661 = vadd.f32 %v2659, %v2660
        %v2662 = vsel %vm2251, %v2525, 0.0
        %v2663 = vadd.f32 %v2661, %v2662
        %v2664 = vsel %vm2251, %v2526, 0.0
        %v2665 = vadd.f32 %v2663, %v2664
        %v2666 = vsel %vm2251, %v2527, 0.0
        %v2667 = vadd.f32 %v2665, %v2666
        %v2668 = vsel %vm2251, %v2528, 0.0
        %v2669 = vadd.f32 %v2667, %v2668
        %v2670 = vsel %vm2251, %v2529, 0.0
        %v2671 = vadd.f32 %v2669, %v2670
        %v2672 = vsel %vm2251, %v2530, 0.0
        %v2673 = vadd.f32 %v2671, %v2672
        %v2674 = vsel %vm2251, %v2531, 0.0
        %v2675 = vadd.f32 %v2673, %v2674
        %v2676 = vsel %vm2251, %v2532, 0.0
        %v2677 = vadd.f32 %v2675, %v2676
        %v2678 = vsel %vm2251, %v2533, 0.0
        %v2679 = vadd.f32 %v2677, %v2678
        %v2680 = vsel %vm2251, %v2534, 0.0
        %v2681 = vadd.f32 %v2679, %v2680
        %v2682 = vsel %vm2251, %v2535, 0.0
        %v2683 = vadd.f32 %v2681, %v2682
        %v2684 = vsel %vm2251, %v2536, 0.0
        %v2685 = vadd.f32 %v2683, %v2684
        %v2686 = vsel %vm2251, %v2537, 0.0
        %v2687 = vadd.f32 %v2685, %v2686
        %v2688 = vsel %vm2251, %v2538, 0.0
        %v2689 = vadd.f32 %v2687, %v2688
        %v2690 = vsel %vm2251, %v2539, 0.0
        %v2691 = vadd.f32 %v2689, %v2690
        %v2692 = vsel %vm2251, %v2540, 0.0
        %v2693 = vadd.f32 %v2691, %v2692
        %v2694 = vsel %vm2251, %v2541, 0.0
        %v2695 = vadd.f32 %v2693, %v2694
        %v2696 = vsel %vm2251, %v2542, 0.0
        %v2697 = vadd.f32 %v2695, %v2696
        %v2698 = vsel %vm2251, %v2543, 0.0
        %v2699 = vadd.f32 %v2697, %v2698
        %v2700 = vsel %vm2251, %v2544, 0.0
        %v2701 = vadd.f32 %v2699, %v2700
        %v2702 = vsel %vm2251, %v2545, 0.0
        %v2703 = vadd.f32 %v2701, %v2702
        %v2704 = vsel %vm2251, %v2546, 0.0
        %v2705 = vadd.f32 %v2703, %v2704
        %v2706 = vsel %vm2251, %v2547, 0.0
        %v2707 = vadd.f32 %v2705, %v2706
        %v2708 = vsel %vm2251, %v2548, 0.0
        %v2709 = vadd.f32 %v2707, %v2708
        %v2710 = vsel %vm2251, %v2549, 0.0
        %v2711 = vadd.f32 %v2709, %v2710
        %v2712 = vsel %vm2251, %v2550, 0.0
        %v2713 = vadd.f32 %v2711, %v2712
        %v2714 = vsel %vm2251, %v2551, 0.0
        %v2715 = vadd.f32 %v2713, %v2714
        %v2716 = vsel %vm2251, %v2552, 0.0
        %v2717 = vadd.f32 %v2715, %v2716
        %v2718 = vsel %vm2251, %v2553, 0.0
        %v2719 = vadd.f32 %v2717, %v2718
        %v2720 = vsel %vm2251, %v2554, 0.0
        %v2721 = vadd.f32 %v2719, %v2720
        %v2722 = vsel %vm2251, %v2555, 0.0
        %v2723 = vadd.f32 %v2721, %v2722
        %v2724 = vsel %vm2251, %v2556, 0.0
        %v2725 = vadd.f32 %v2723, %v2724
        %v2726 = vsel %vm2251, %v2557, 0.0
        %v2727 = vadd.f32 %v2725, %v2726
        %v2728 = vsel %vm2251, %v2558, 0.0
        %v2729 = vadd.f32 %v2727, %v2728
        %v2730 = vsel %vm2251, %v2559, 0.0
        %v2731 = vadd.f32 %v2729, %v2730
        %v2732 = vsel %vm2251, %v2560, 0.0
        %v2733 = vadd.f32 %v2731, %v2732
        %v2734 = vsel %vm2251, %v2561, 0.0
        %v2735 = vadd.f32 %v2733, %v2734
        %v2736 = vsel %vm2251, %v2562, 0.0
        %v2737 = vadd.f32 %v2735, %v2736
        %v2738 = vsel %vm2251, %v2563, 0.0
        %v2739 = vadd.f32 %v2737, %v2738
        %v2740 = vsel %vm2251, %v2564, 0.0
        %v2741 = vadd.f32 %v2739, %v2740
        %v2742 = vsel %vm2251, %v2565, 0.0
        %v2743 = vadd.f32 %v2741, %v2742
        %v2744 = vsel %vm2251, %v2566, 0.0
        %v2745 = vadd.f32 %v2743, %v2744
        %v2746 = vsel %vm2251, %v2567, 0.0
        %v2747 = vadd.f32 %v2745, %v2746
        %v2748 = vsel %vm2251, %v2568, 0.0
        %v2749 = vadd.f32 %v2747, %v2748
        %v2750 = vsel %vm2251, %v2569, 0.0
        %v2751 = vadd.f32 %v2749, %v2750
        %v2752 = vsel %vm2251, %v2570, 0.0
        %v2753 = vadd.f32 %v2751, %v2752
        %v2754 = vsel %vm2251, %v2571, 0.0
        %v2755 = vadd.f32 %v2753, %v2754
        %v2756 = vsel %vm2251, %v2572, 0.0
        %v2757 = vadd.f32 %v2755, %v2756
        %v2758 = vsel %vm2251, %v2573, 0.0
        %v2759 = vadd.f32 %v2757, %v2758
        %v2760 = vsel %vm2251, %v2574, 0.0
        %v2761 = vadd.f32 %v2759, %v2760
        %v2762 = vsel %vm2251, %v2575, 0.0
        %v2763 = vadd.f32 %v2761, %v2762
        %v2764 = vsel %vm2251, %v2576, 0.0
        %v2765 = vadd.f32 %v2763, %v2764
        %v2766 = vsel %vm2251, %v2577, 0.0
        %v2767 = vadd.f32 %v2765, %v2766
        %v2768 = vsel %vm2251, %v2578, 0.0
        %v2769 = vadd.f32 %v2767, %v2768
        %v2770 = vsel %vm2251, %v2579, 0.0
        %v2771 = vadd.f32 %v2769, %v2770
        %v2772 = vsel %vm2251, %v2580, 0.0
        %v2773 = vadd.f32 %v2771, %v2772
        %v2774 = vsel %vm2251, %v2581, 0.0
        %v2775 = vadd.f32 %v2773, %v2774
        %v2776 = vsel %vm2251, %v2582, 0.0
        %v2777 = vadd.f32 %v2775, %v2776
        %v2778 = vsel %vm2251, %v2583, 0.0
        %v2779 = vadd.f32 %v2777, %v2778
        %v2780 = vsel %vm2251, %v2584, 0.0
        %v2781 = vadd.f32 %v2779, %v2780
        %v2782 = vsel %vm2251, %v2585, 0.0
        %v2783 = vadd.f32 %v2781, %v2782
        %v2784 = vsel %vm2251, %v2586, 0.0
        %v2785 = vadd.f32 %v2783, %v2784
        %v2786 = vsel %vm2251, %v2587, 0.0
        %v2787 = vadd.f32 %v2785, %v2786
        %v2788 = vsel %vm2251, %v2588, 0.0
        %v2789 = vadd.f32 %v2787, %v2788
        %v2790 = vsel %vm2251, %v2589, 0.0
        %v2791 = vadd.f32 %v2789, %v2790
        %v2792 = vsel %vm2251, %v2590, 0.0
        %v2793 = vadd.f32 %v2791, %v2792
        %v2794 = vsel %vm2251, %v2591, 0.0
        %v2795 = vadd.f32 %v2793, %v2794
        %v2796 = vsel %vm2251, %v2592, 0.0
        %v2797 = vadd.f32 %v2795, %v2796
        %v2798 = vsel %vm2251, %v2593, 0.0
        %v2799 = vadd.f32 %v2797, %v2798
        %v2800 = vsel %vm2251, %v2594, 0.0
        %v2801 = vadd.f32 %v2799, %v2800
        %v2802 = vsel %vm2251, %v2595, 0.0
        %v2803 = vadd.f32 %v2801, %v2802
        %v2804 = vsel %vm2251, %v2596, 0.0
        %v2805 = vadd.f32 %v2803, %v2804
        %v2806 = vsel %vm2251, %v2597, 0.0
        %v2807 = vadd.f32 %v2805, %v2806
        %v2808 = vsel %vm2251, %v2598, 0.0
        %v2809 = vadd.f32 %v2807, %v2808
        %v2810 = vsel %vm2251, %v2599, 0.0
        %v2811 = vadd.f32 %v2809, %v2810
        %v2812 = vsel %vm2251, %v2600, 0.0
        %v2813 = vadd.f32 %v2811, %v2812
        %v2814 = vsel %vm2251, %v2601, 0.0
        %v2815 = vadd.f32 %v2813, %v2814
        %v2816 = vsel %vm2251, %v2602, 0.0
        %v2817 = vadd.f32 %v2815, %v2816
        %v2818 = vsel %vm2251, %v2603, 0.0
        %v2819 = vadd.f32 %v2817, %v2818
        %v2820 = vsel %vm2251, %v2604, 0.0
        %v2821 = vadd.f32 %v2819, %v2820
        %v2822 = vsel %vm2251, %v2605, 0.0
        %v2823 = vadd.f32 %v2821, %v2822
        %v2824 = vsel %vm2251, %v2606, 0.0
        %v2825 = vadd.f32 %v2823, %v2824
        %v2826 = vsel %vm2251, %v2607, 0.0
        %v2827 = vadd.f32 %v2825, %v2826
        %v2828 = vsel %vm2251, %v2608, 0.0
        %v2829 = vadd.f32 %v2827, %v2828
        %v2830 = vsel %vm2251, %v2609, 0.0
        %v2831 = vadd.f32 %v2829, %v2830
        %v2832 = vsel %vm2251, %v2610, 0.0
        %v2833 = vadd.f32 %v2831, %v2832
        %v2834 = vsel %vm2251, %v2611, 0.0
        %v2835 = vadd.f32 %v2833, %v2834
        %v2836 = vsel %vm2251, %v2612, 0.0
        %v2837 = vadd.f32 %v2835, %v2836
        %v2838 = vsel %vm2251, %v2613, 0.0
        %v2839 = vadd.f32 %v2837, %v2838
        %v2840 = vsel %vm2251, %v2614, 0.0
        %v2841 = vadd.f32 %v2839, %v2840
        %v2842 = vsel %vm2251, %v2615, 0.0
        %v2843 = vadd.f32 %v2841, %v2842
        %v2844 = vsel %vm2251, %v2616, 0.0
        %v2845 = vadd.f32 %v2843, %v2844
        %v2846 = vsel %vm2251, %v2617, 0.0
        %v2847 = vadd.f32 %v2845, %v2846
        %v2848 = vsel %vm2251, %v2618, 0.0
        %v2849 = vadd.f32 %v2847, %v2848
        %v2850 = vsel %vm2251, %v2619, 0.0
        %v2851 = vadd.f32 %v2849, %v2850
        %v2852 = vsel %vm2251, %v2620, 0.0
        %v2853 = vadd.f32 %v2851, %v2852
        %v2854 = vsel %vm2251, %v2621, 0.0
        %v2855 = vadd.f32 %v2853, %v2854
        %v2856 = vsel %vm2251, %v2622, 0.0
        %v2857 = vadd.f32 %v2855, %v2856
        %v2858 = vsel %vm2251, %v2623, 0.0
        %v2859 = vadd.f32 %v2857, %v2858
        %v2860 = vsel %vm2251, %v2624, 0.0
        %v2861 = vadd.f32 %v2859, %v2860
        %v2862 = vsel %vm2251, %v2625, 0.0
        %v2863 = vadd.f32 %v2861, %v2862
        %v2864 = vsel %vm2251, %v2626, 0.0
        %v2865 = vadd.f32 %v2863, %v2864
        %v2866 = vsel %vm2251, %v2627, 0.0
        %v2867 = vadd.f32 %v2865, %v2866
        %v2868 = vsel %vm2251, %v2628, 0.0
        %v2869 = vadd.f32 %v2867, %v2868
        %v2870 = vsel %vm2251, %v2629, 0.0
        %v2871 = vadd.f32 %v2869, %v2870
        %v2872 = vsel %vm2251, %v2630, 0.0
        %v2873 = vadd.f32 %v2871, %v2872
        %v2874 = vsel %vm2251, %v2631, 0.0
        %v2875 = vadd.f32 %v2873, %v2874
        %v2876 = vsel %vm2251, %v2632, 0.0
        %v2877 = vadd.f32 %v2875, %v2876
        %v2878 = vsel %vm2251, %v2633, 0.0
        %v2879 = vadd.f32 %v2877, %v2878
        %v2880 = vsel %vm2251, %v2634, 0.0
        %v2881 = vadd.f32 %v2879, %v2880
        %v2882 = vsel %vm2251, %v2635, 0.0
        %v2883 = vadd.f32 %v2881, %v2882
        %v2884 = vsel %vm2251, %v2636, 0.0
        %v2885 = vadd.f32 %v2883, %v2884
        %v2886 = vsel %vm2251, %v2637, 0.0
        %v2887 = vadd.f32 %v2885, %v2886
        %v2888 = vsel %vm2251, %v2638, 0.0
        %v2889 = vadd.f32 %v2887, %v2888
        %v2890 = vsel %vm2251, %v2639, 0.0
        %v2891 = vadd.f32 %v2889, %v2890
        %v2892 = vsel %vm2251, %v2640, 0.0
        %v2893 = vadd.f32 %v2891, %v2892
        %v2894 = vsel %vm2251, %v2641, 0.0
        %v2895 = vadd.f32 %v2893, %v2894
        %v2896 = vsel %vm2251, %v2642, 0.0
        %v2897 = vadd.f32 %v2895, %v2896
        %v2898 = vrot.slane %v2897, 4
        %v2899 = vadd.f32 %v2897, %v2898
        %v2900 = vrot.slane %v2899, 2
        %v2901 = vadd.f32 %v2899, %v2900
        %v2902 = vrot.slane %v2901, 1
        %v2903 = vadd.f32 %v2901, %v2902
        %2904 = vst.msk [vmem:[%s333] sm:$0x1] %vm2513, %v2903
        %s2905 = smul.u32 128, %s32
        %p2906 = scmp.lt.s32.totalorder %s2905, 1023
        %s2907 = scalar_select %p2906, %s2905, 1023
        %p2908 = scmp.lt.s32.totalorder %s33, 0
        %s2909 = scalar_select %p2908, %s33, 0
        %s2910 = sadd.s32 %s2909, %s2907
        %s2911 = smul.addr %s2910, 4
        %s2912 = scalar_lea.vmem %s3, %s2911
        %s2913 = sand.u32 %s166, 1
        %s2914 = scalar_lea.sflag [#allocation4], %s2913
        %s2915 = sand.u32 %s166, 1
        %s2916 = scalar_lea.vmem [#allocation7], %s2915
        %s2917 = sand.u32 %s194, 1
        %s2918 = scalar_lea.sflag [#allocation9], %s2917
        %s2919 = sand.u32 %s194, 1
        %s2920 = scalar_lea.vmem [#allocation8], %s2919
        // Predicated region
        $region41: #{tpu_custom_call.1} parent=31 // pred_check
          %p2921 = pneg %p148
        $region42: #{tpu_custom_call.1} parent=31 // pred_check_branch
          %2923 = sbr.rel (%p2921) target = $region44
        $region43: #{tpu_custom_call.1} parent=31 // pred_region
          %s2924 = smul.u32 128, %s32
        $region44: #{tpu_custom_call.1} parent=31 // pred_fallthru
          _
        // Predicated region
        $region45: #{tpu_custom_call.1} parent=31 // pred_check
          %p2925 = pneg %p176
        $region46: #{tpu_custom_call.1} parent=31 // pred_check_branch
          %2927 = sbr.rel (%p2925) target = $region48
        $region47: #{tpu_custom_call.1} parent=31 // pred_region
          %s2929 = ssub.s32 16, 16
          %2930 = vsyncadd %s2914, %s2929
          %s2931 = sadd.s32 %s33, %s32
          %s2932 = smul.addr %s2931, 16
          %s2933 = scalar_lea.hbm %s4, %s2932
          %s2935 = sshll.u32 %s2916, 4
          %s2936 = int_to_ptr.vmem [resolvable:$true] %s2935
          %2938 = dma.vmem_to_hbm [thread:$0]  %s2936, 16, %s2933, %s2914
        $region48: #{tpu_custom_call.1} parent=31 // pred_fallthru
          _
        // Predicated region
        $region49: #{tpu_custom_call.1} parent=31 // pred_check
          %p2939 = pneg %p204
        $region50: #{tpu_custom_call.1} parent=31 // pred_check_branch
          %2941 = sbr.rel (%p2939) target = $region52
        $region51: #{tpu_custom_call.1} parent=31 // pred_region
          %s2943 = ssub.s32 16, 16
          %2944 = vsyncadd %s2918, %s2943
          %s2945 = sadd.s32 %s33, %s32
          %s2946 = smul.addr %s2945, 16
          %s2947 = scalar_lea.hbm %s5, %s2946
          %s2949 = sshll.u32 %s2920, 4
          %s2950 = int_to_ptr.vmem [resolvable:$true] %s2949
          %2952 = dma.vmem_to_hbm [thread:$0]  %s2950, 16, %s2947, %s2918
        $region52: #{tpu_custom_call.1} parent=31 // pred_fallthru
          _
      $region32: #{tpu_custom_call.1} parent=5 // pred_fallthru
        _
      %p2953 = scmp.le.s32.totalorder 2, %s22
      // Predicated region
      $region53: #{tpu_custom_call.1} parent=5 // pred_check
        %p2954 = pneg %p2953
      $region54: #{tpu_custom_call.1} parent=5 // pred_check_branch
        %2956 = sbr.rel (%p2954) target = $region56
      $region55: #{tpu_custom_call.1} parent=5 // pred_region
        %s2957 = ssub.s32 %s22, 2
        // Predicated region
        $region57: #{tpu_custom_call.1} parent=55 // pred_check
          %p2958 = pneg %p154
        $region58: #{tpu_custom_call.1} parent=55 // pred_check_branch
          %2960 = sbr.rel (%p2958) target = $region60
        $region59: #{tpu_custom_call.1} parent=55 // pred_region
          %s2961 = smul.u32 128, %s35
          %p2962 = scmp.lt.s32.totalorder %s2961, 1023
          %s2963 = scalar_select %p2962, %s2961, 1023
          %p2964 = scmp.lt.s32.totalorder %s36, 0
          %s2965 = scalar_select %p2964, %s36, 0
          %s2966 = sadd.s32 %s2965, %s2963
          %s2967 = smul.addr %s2966, 4
          %s2968 = scalar_lea.vmem %s3, %s2967
        $region60: #{tpu_custom_call.1} parent=55 // pred_fallthru
          _
        // Predicated region
        $region61: #{tpu_custom_call.1} parent=55 // pred_check
          %p2969 = pneg %p182
        $region62: #{tpu_custom_call.1} parent=55 // pred_check_branch
          %2971 = sbr.rel (%p2969) target = $region64
        $region63: #{tpu_custom_call.1} parent=55 // pred_region
          %s2972 = sand.u32 %s167, 1
          %s2973 = scalar_lea.sflag [#allocation4], %s2972
          %s2974 = sand.u32 %s167, 1
          %s2975 = scalar_lea.vmem [#allocation7], %s2974
          %2976 = dma.done %s2973, 16
        $region64: #{tpu_custom_call.1} parent=55 // pred_fallthru
          _
        // Predicated region
        $region65: #{tpu_custom_call.1} parent=55 // pred_check
          %p2977 = pneg %p210
        $region66: #{tpu_custom_call.1} parent=55 // pred_check_branch
          %2979 = sbr.rel (%p2977) target = $region68
        $region67: #{tpu_custom_call.1} parent=55 // pred_region
          %s2980 = sand.u32 %s195, 1
          %s2981 = scalar_lea.sflag [#allocation9], %s2980
          %s2982 = sand.u32 %s195, 1
          %s2983 = scalar_lea.vmem [#allocation8], %s2982
          %2984 = dma.done %s2981, 16
        $region68: #{tpu_custom_call.1} parent=55 // pred_fallthru
          _
      $region56: #{tpu_custom_call.1} parent=5 // pred_fallthru
        _
    $region6: #{tpu_custom_call.1} parent=1 // loop_footer
      %s26 = sadd.s32 1, %s22
    $region7: #{tpu_custom_call.1} parent=1 // loop_footer_branch
      %21 = sbr.rel target = $region3
    $region8: #{tpu_custom_call.1} parent=1 // loop_exit
      _
    %2985 = vsyncpa [#allocation3], 1
    %s2986 = scalar_lea.sflag [#allocation3], 1
    %2987 = vsyncpa %s2986, 1
    %2988 = vsyncpa [#allocation6], 1
    %2989 = vsyncpa [#allocation4], 1
    %s2990 = scalar_lea.sflag [#allocation4], 1
    %2991 = vsyncpa %s2990, 1
    %2992 = vsyncpa [#allocation9], 1
    %s2993 = scalar_lea.sflag [#allocation9], 1
    %2994 = vsyncpa %s2993, 1

</llo_original>
